<compile_context>
chip_gen: v7x
topology: tpu7x:2x2x1
jax: 0.10.0
libtpu: 0.0.40
codegen_flags: <defaults>
</compile_context>

<pallas_src>
import functools

import jax
import jax.numpy as jnp
from jax.experimental import pallas as pl
from jax.experimental.pallas import tpu as pltpu

_LANE = 128                      # lane width (last dim)
_SUBLANE = 8                     # f32 sublane width (second-last dim)
_MAX_BATCH_TILE = 512            # review: 512-row tiles ~85% of HBM roofline
_PARAM_BUDGET_BYTES = 24 << 20   # resident params per fused chunk (v7x-safe)


def _round_up(x, m):
    return ((x + m - 1) // m) * m


# ---------------------------------------------------------------------------
# Fused kernel: x -> L x (matmul + bias [+ relu]) -> out, all in one body.
# refs = (x_ref, w_0, ..., w_{L-1}, bias_pack_ref, o_ref)
# layer_meta = ((dout_padded, apply_relu), ...)   -- static per layer
# ---------------------------------------------------------------------------
def _fused_mlp_kernel(*refs, layer_meta, matmul_dtype):
    x_ref = refs[0]
    o_ref = refs[-1]
    b_ref = refs[-2]
    w_refs = refs[1:-2]

    h = x_ref[...]
    for l, (fo_p, apply_relu) in enumerate(layer_meta):
        lhs = h if h.dtype == matmul_dtype else h.astype(matmul_dtype)
        h = jnp.dot(lhs, w_refs[l][...], preferred_element_type=jnp.float32)
        h = h + b_ref[l:l + 1, :fo_p]          # f32 epilogue on the VPU
        if apply_relu:
            h = jnp.maximum(h, 0.0)
    o_ref[...] = h.astype(o_ref.dtype)


# ---------------------------------------------------------------------------
# Parameter construction (mimics torch.nn.Linear default init).
# ---------------------------------------------------------------------------
def _init_linear(key, fan_in, fan_out, dtype=jnp.float32):
    kw, kb = jax.random.split(key)
    bound = 1.0 / jnp.sqrt(jnp.asarray(fan_in, dtype))
    w = jax.random.uniform(kw, (fan_in, fan_out), dtype, -bound, bound)
    b = jax.random.uniform(kb, (fan_out,), dtype, -bound, bound)
    return w, b


def make_autoencoder_params(key, in_dim, latent_dim, n_layers_enc, layer_size):
    """Returns list of (w, b, apply_relu): encoder layers then decoder layers."""
    dims = []
    for i in range(n_layers_enc + 1):          # encoder
        if i == 0:
            dims.append((in_dim, layer_size, True))
        elif i == n_layers_enc:
            dims.append((layer_size, latent_dim, False))
        else:
            dims.append((layer_size, layer_size, True))
    for i in range(n_layers_enc + 1):          # decoder
        if i == 0:
            dims.append((latent_dim, layer_size, True))
        elif i == n_layers_enc:
            dims.append((layer_size, in_dim, False))
        else:
            dims.append((layer_size, layer_size, True))

    layers = []
    keys = jax.random.split(key, len(dims))
    for k, (fi, fo, relu) in zip(keys, dims):
        w, b = _init_linear(k, fi, fo)
        layers.append((w, b, relu))
    return layers


# ---------------------------------------------------------------------------
# One-time layout prep (hoisted out of the forward path).
# ---------------------------------------------------------------------------
def prepare_autoencoder(layers, *, matmul_dtype=jnp.float32,
                        param_budget_bytes=_PARAM_BUDGET_BYTES):
    """Pad, cast, chunk and pack the parameters.

    * zero-pads every weight/bias to lane-dense (128-multiple) feature dims
      (exact: padded columns stay zero through every layer, ReLU(0)=0),
    * casts matmul operands to `matmul_dtype` (bf16 for v6e/v7x MXU),
    * greedily groups layers into chunks whose padded params fit the VMEM
      budget (weight-streaming fallback for large layer_size),
    * packs each chunk's biases into one (L, max_dout_padded) f32 array.

    Returns a list of chunks: (weights_tuple, bias_pack, layer_meta).
    """
    matmul_dtype = jnp.dtype(matmul_dtype)
    padded = []
    for w, b, relu in layers:
        fi, fo = w.shape
        fi_p, fo_p = _round_up(fi, _LANE), _round_up(fo, _LANE)
        w_p = jnp.zeros((fi_p, fo_p), matmul_dtype).at[:fi, :fo].set(
            w.astype(matmul_dtype))
        b_p = jnp.zeros((fo_p,), jnp.float32).at[:fo].set(b.astype(jnp.float32))
        nbytes = w_p.size * w_p.dtype.itemsize + b_p.size * 4
        padded.append((w_p, b_p, bool(relu), fo_p, nbytes))

    # Greedy chunking under the resident-parameter budget.
    groups, cur, cur_bytes = [], [], 0
    for item in padded:
        if cur and cur_bytes + item[4] > param_budget_bytes:
            groups.append(cur)
            cur, cur_bytes = [], 0
        cur.append(item)
        cur_bytes += item[4]
    if cur:
        groups.append(cur)

    chunks = []
    for grp in groups:
        ws = tuple(w_p for (w_p, _, _, _, _) in grp)
        max_fo = max(fo_p for (_, _, _, fo_p, _) in grp)
        bias_pack = jnp.zeros((len(grp), max_fo), jnp.float32)
        for l, (_, b_p, _, fo_p, _) in enumerate(grp):
            bias_pack = bias_pack.at[l, :fo_p].set(b_p)
        layer_meta = tuple((fo_p, relu) for (_, _, relu, fo_p, _) in grp)
        chunks.append((ws, bias_pack, layer_meta))
    return chunks


# ---------------------------------------------------------------------------
# Tiling / VMEM-budget helpers.
# ---------------------------------------------------------------------------
def _pick_batch_tile(B, max_tile=_MAX_BATCH_TILE):
    b8 = _round_up(B, _SUBLANE)
    tb = min(max_tile, b8)
    # v7x has 2 TensorCores: keep >= 2 "parallel" grid steps when B allows.
    if b8 // tb < 2 and b8 >= 2 * _SUBLANE:
        tb = _round_up(-(-b8 // 2), _SUBLANE)
    b_pad = _round_up(b8, tb)
    return tb, b_pad


def _vmem_limit_bytes(tb, din_p, dout_p, ws, bias_pack, single_buffer):
    io = 2 * tb * (din_p + dout_p) * 4               # double-buffered x / out tiles
    pfac = 1 if single_buffer else 2
    params = (sum(w.size * w.dtype.itemsize for w in ws)
              + bias_pack.size * 4) * pfac
    max_d = max(max(w.shape) for w in ws)
    act = 4 * tb * max_d * 4                         # activation temp headroom
    need = io + params + act + (4 << 20)
    return int(min(max(need, 32 << 20), 64 << 20))   # 64 MiB = v7x physical VMEM


# ---------------------------------------------------------------------------
# One fused chunk = one pallas_call.
# ---------------------------------------------------------------------------
def _run_chunk_impl(x_p, ws, bias_pack, layer_meta, tb, single_buffer):
    b_pad, din_p = x_p.shape
    dout_p = layer_meta[-1][0]
    grid = (b_pad // tb,)
    matmul_dtype = ws[0].dtype

    resident_kw = {"pipeline_mode": pl.Buffered(1)} if single_buffer else {}
    in_specs = [pl.BlockSpec((tb, din_p), lambda i: (i, 0))]
    for w in ws:
        # Grid-invariant: stays resident in VMEM across all batch tiles.
        in_specs.append(pl.BlockSpec(w.shape, lambda i: (0, 0), **resident_kw))
    in_specs.append(pl.BlockSpec(bias_pack.shape, lambda i: (0, 0),
                                 **resident_kw))
    out_specs = pl.BlockSpec((tb, dout_p), lambda i: (i, 0))

    flops = sum(2 * b_pad * w.shape[0] * w.shape[1] for w in ws)
    bytes_accessed = (x_p.size * 4 + b_pad * dout_p * 4 + bias_pack.size * 4
                      + sum(w.size * w.dtype.itemsize for w in ws))

    kernel = functools.partial(_fused_mlp_kernel, layer_meta=layer_meta,
                               matmul_dtype=matmul_dtype)
    return pl.pallas_call(
        kernel,
        out_shape=jax.ShapeDtypeStruct((b_pad, dout_p), x_p.dtype),
        grid=grid,
        in_specs=in_specs,
        out_specs=out_specs,
        compiler_params=pltpu.CompilerParams(
            dimension_semantics=("parallel",),
            vmem_limit_bytes=_vmem_limit_bytes(
                tb, din_p, dout_p, ws, bias_pack, single_buffer),
        ),
        cost_estimate=pl.CostEstimate(flops=int(flops), transcendentals=0,
                                      bytes_accessed=int(bytes_accessed)),
    )(x_p, *ws, bias_pack)


def _run_chunk(x_p, ws, bias_pack, layer_meta, tb):
    try:
        return _run_chunk_impl(x_p, ws, bias_pack, layer_meta, tb,
                               single_buffer=True)
    except Exception:
        # pl.Buffered(1) not accepted by this jax build -> default pipelining.
        return _run_chunk_impl(x_p, ws, bias_pack, layer_meta, tb,
                               single_buffer=False)


# ---------------------------------------------------------------------------
# Full autoencoder forward.
# ---------------------------------------------------------------------------
def autoencoder_forward(x, prepared_chunks, out_dim):
    B, Din = x.shape
    din_p = prepared_chunks[0][0][0].shape[0]
    dout_p = prepared_chunks[-1][2][-1][0]

    tb, b_pad = _pick_batch_tile(B)

    # Skip the pad copy when x is already tile-aligned and lane-dense.
    if (B, Din) == (b_pad, din_p):
        h = x
    else:
        h = jnp.zeros((b_pad, din_p), x.dtype).at[:B, :Din].set(x)

    for ws, bias_pack, layer_meta in prepared_chunks:
        h = _run_chunk(h, ws, bias_pack, layer_meta, tb)

    # Skip the output slice when nothing was padded.
    if (B, out_dim) == (b_pad, dout_p):
        return h
    return h[:B, :out_dim]


# ---------------------------------------------------------------------------
# Pure-JAX reference.
# ---------------------------------------------------------------------------
def autoencoder_ref(x, layers):
    h = x
    for w, b, relu in layers:
        h = h @ w + b
        if relu:
            h = jnp.maximum(h, 0.0)
    return h


if __name__ == "__main__":
    # Small shapes consistent with the module's forward.
    batch = 8
    in_dim = 32
    latent_dim = 8
    n_layers_enc = 2
    layer_size = 64

    key = jax.random.PRNGKey(0)
    kx, kp = jax.random.split(key)

    x = jax.random.normal(kx, (batch, in_dim), jnp.float32)
    layers = make_autoencoder_params(kp, in_dim, latent_dim, n_layers_enc,
                                     layer_size)
    ref = jax.block_until_ready(autoencoder_ref(x, layers))

    # f32 matmul path (exact; default — matches v5e guidance and 1e-5 tolerance).
    prepared_f32 = prepare_autoencoder(layers, matmul_dtype=jnp.float32)
    out = jax.block_until_ready(
        autoencoder_forward(x, prepared_f32, out_dim=in_dim))
    assert out.shape == (batch, in_dim), out.shape
    assert jnp.allclose(out, ref, atol=1e-5, rtol=1e-5), "f32 mismatch vs reference"

    # bf16 matmul path (MXU-native on v6e/v7x; halves resident weight VMEM).
    prepared_bf16 = prepare_autoencoder(layers, matmul_dtype=jnp.bfloat16)
    out_bf16 = jax.block_until_ready(
        autoencoder_forward(x, prepared_bf16, out_dim=in_dim))
    assert out_bf16.shape == (batch, in_dim), out_bf16.shape
    assert jnp.allclose(out_bf16, ref, atol=5e-2, rtol=5e-2), "bf16 mismatch vs reference"

    print("KERNEL_OK")
</pallas_src>

<mosaic_0001>
module attributes {stable_mosaic.version = 11 : i64} {
  func.func @_fused_mlp_kernel(%arg0: i32, %arg1: memref<8x128xf32, #tpu.memory_space<vmem>>, %arg2: memref<128x128xf32, #tpu.memory_space<vmem>>, %arg3: memref<128x128xf32, #tpu.memory_space<vmem>>, %arg4: memref<128x128xf32, #tpu.memory_space<vmem>>, %arg5: memref<128x128xf32, #tpu.memory_space<vmem>>, %arg6: memref<128x128xf32, #tpu.memory_space<vmem>>, %arg7: memref<128x128xf32, #tpu.memory_space<vmem>>, %arg8: memref<6x128xf32, #tpu.memory_space<vmem>>, %arg9: memref<8x128xf32, #tpu.memory_space<vmem>>) attributes {dimension_semantics = [#tpu.dimension_semantics<parallel>], iteration_bounds = array<i64: 1>, scalar_prefetch = 0 : i64, scratch_operands = 0 : i64, tpu.core_type = #tpu.core_type<tc>, window_params = [{transform_indices = @transform_0, window_bounds = array<i64: 8, 128>}, {pipeline_mode = #tpu.pipeline_mode<synchronous>, transform_indices = @transform_1, window_bounds = array<i64: 128, 128>}, {pipeline_mode = #tpu.pipeline_mode<synchronous>, transform_indices = @transform_2, window_bounds = array<i64: 128, 128>}, {pipeline_mode = #tpu.pipeline_mode<synchronous>, transform_indices = @transform_3, window_bounds = array<i64: 128, 128>}, {pipeline_mode = #tpu.pipeline_mode<synchronous>, transform_indices = @transform_4, window_bounds = array<i64: 128, 128>}, {pipeline_mode = #tpu.pipeline_mode<synchronous>, transform_indices = @transform_5, window_bounds = array<i64: 128, 128>}, {pipeline_mode = #tpu.pipeline_mode<synchronous>, transform_indices = @transform_6, window_bounds = array<i64: 128, 128>}, {pipeline_mode = #tpu.pipeline_mode<synchronous>, transform_indices = @transform_7, window_bounds = array<i64: 6, 128>}, {transform_indices = @transform_8, window_bounds = array<i64: 8, 128>}]} {
    %c0 = arith.constant 0 : index
    %c0_0 = arith.constant 0 : index
    %0 = vector.load %arg1[%c0, %c0_0] : memref<8x128xf32, #tpu.memory_space<vmem>>, vector<8x128xf32>
    %c0_1 = arith.constant 0 : index
    %c0_2 = arith.constant 0 : index
    %1 = vector.load %arg2[%c0_1, %c0_2] : memref<128x128xf32, #tpu.memory_space<vmem>>, vector<128x128xf32>
    %cst = arith.constant dense<0.000000e+00> : vector<8x128xf32>
    %2 = tpu.matmul %0, %1, %cst {dimension_numbers = #tpu.dot_dimension_numbers<[1], [0], [0], [1], [0, 0, 1, 1], [], []>} : vector<8x128xf32>, vector<128x128xf32>, vector<8x128xf32> -> vector<8x128xf32>
    %c0_3 = arith.constant 0 : index
    %c0_4 = arith.constant 0 : index
    %3 = vector.load %arg8[%c0_3, %c0_4] : memref<6x128xf32, #tpu.memory_space<vmem>>, vector<1x128xf32>
    %4 = vector.broadcast %3 : vector<1x128xf32> to vector<8x128xf32>
    %5 = arith.addf %2, %4 : vector<8x128xf32>
    %cst_5 = arith.constant 0.000000e+00 : f32
    %6 = vector.broadcast %cst_5 : f32 to vector<8x128xf32>
    %7 = arith.maximumf %5, %6 : vector<8x128xf32>
    %c0_6 = arith.constant 0 : index
    %c0_7 = arith.constant 0 : index
    %8 = vector.load %arg3[%c0_6, %c0_7] : memref<128x128xf32, #tpu.memory_space<vmem>>, vector<128x128xf32>
    %cst_8 = arith.constant dense<0.000000e+00> : vector<8x128xf32>
    %9 = tpu.matmul %7, %8, %cst_8 {dimension_numbers = #tpu.dot_dimension_numbers<[1], [0], [0], [1], [0, 0, 1, 1], [], []>} : vector<8x128xf32>, vector<128x128xf32>, vector<8x128xf32> -> vector<8x128xf32>
    %c1 = arith.constant 1 : index
    %c0_9 = arith.constant 0 : index
    %10 = vector.load %arg8[%c1, %c0_9] : memref<6x128xf32, #tpu.memory_space<vmem>>, vector<1x128xf32>
    %11 = vector.broadcast %10 : vector<1x128xf32> to vector<8x128xf32>
    %12 = arith.addf %9, %11 : vector<8x128xf32>
    %cst_10 = arith.constant 0.000000e+00 : f32
    %13 = vector.broadcast %cst_10 : f32 to vector<8x128xf32>
    %14 = arith.maximumf %12, %13 : vector<8x128xf32>
    %c0_11 = arith.constant 0 : index
    %c0_12 = arith.constant 0 : index
    %15 = vector.load %arg4[%c0_11, %c0_12] : memref<128x128xf32, #tpu.memory_space<vmem>>, vector<128x128xf32>
    %cst_13 = arith.constant dense<0.000000e+00> : vector<8x128xf32>
    %16 = tpu.matmul %14, %15, %cst_13 {dimension_numbers = #tpu.dot_dimension_numbers<[1], [0], [0], [1], [0, 0, 1, 1], [], []>} : vector<8x128xf32>, vector<128x128xf32>, vector<8x128xf32> -> vector<8x128xf32>
    %c2 = arith.constant 2 : index
    %c0_14 = arith.constant 0 : index
    %17 = vector.load %arg8[%c2, %c0_14] : memref<6x128xf32, #tpu.memory_space<vmem>>, vector<1x128xf32>
    %18 = vector.broadcast %17 : vector<1x128xf32> to vector<8x128xf32>
    %19 = arith.addf %16, %18 : vector<8x128xf32>
    %c0_15 = arith.constant 0 : index
    %c0_16 = arith.constant 0 : index
    %20 = vector.load %arg5[%c0_15, %c0_16] : memref<128x128xf32, #tpu.memory_space<vmem>>, vector<128x128xf32>
    %cst_17 = arith.constant dense<0.000000e+00> : vector<8x128xf32>
    %21 = tpu.matmul %19, %20, %cst_17 {dimension_numbers = #tpu.dot_dimension_numbers<[1], [0], [0], [1], [0, 0, 1, 1], [], []>} : vector<8x128xf32>, vector<128x128xf32>, vector<8x128xf32> -> vector<8x128xf32>
    %c3 = arith.constant 3 : index
    %c0_18 = arith.constant 0 : index
    %22 = vector.load %arg8[%c3, %c0_18] : memref<6x128xf32, #tpu.memory_space<vmem>>, vector<1x128xf32>
    %23 = vector.broadcast %22 : vector<1x128xf32> to vector<8x128xf32>
    %24 = arith.addf %21, %23 : vector<8x128xf32>
    %cst_19 = arith.constant 0.000000e+00 : f32
    %25 = vector.broadcast %cst_19 : f32 to vector<8x128xf32>
    %26 = arith.maximumf %24, %25 : vector<8x128xf32>
    %c0_20 = arith.constant 0 : index
    %c0_21 = arith.constant 0 : index
    %27 = vector.load %arg6[%c0_20, %c0_21] : memref<128x128xf32, #tpu.memory_space<vmem>>, vector<128x128xf32>
    %cst_22 = arith.constant dense<0.000000e+00> : vector<8x128xf32>
    %28 = tpu.matmul %26, %27, %cst_22 {dimension_numbers = #tpu.dot_dimension_numbers<[1], [0], [0], [1], [0, 0, 1, 1], [], []>} : vector<8x128xf32>, vector<128x128xf32>, vector<8x128xf32> -> vector<8x128xf32>
    %c4 = arith.constant 4 : index
    %c0_23 = arith.constant 0 : index
    %29 = vector.load %arg8[%c4, %c0_23] : memref<6x128xf32, #tpu.memory_space<vmem>>, vector<1x128xf32>
    %30 = vector.broadcast %29 : vector<1x128xf32> to vector<8x128xf32>
    %31 = arith.addf %28, %30 : vector<8x128xf32>
    %cst_24 = arith.constant 0.000000e+00 : f32
    %32 = vector.broadcast %cst_24 : f32 to vector<8x128xf32>
    %33 = arith.maximumf %31, %32 : vector<8x128xf32>
    %c0_25 = arith.constant 0 : index
    %c0_26 = arith.constant 0 : index
    %34 = vector.load %arg7[%c0_25, %c0_26] : memref<128x128xf32, #tpu.memory_space<vmem>>, vector<128x128xf32>
    %cst_27 = arith.constant dense<0.000000e+00> : vector<8x128xf32>
    %35 = tpu.matmul %33, %34, %cst_27 {dimension_numbers = #tpu.dot_dimension_numbers<[1], [0], [0], [1], [0, 0, 1, 1], [], []>} : vector<8x128xf32>, vector<128x128xf32>, vector<8x128xf32> -> vector<8x128xf32>
    %c5 = arith.constant 5 : index
    %c0_28 = arith.constant 0 : index
    %36 = vector.load %arg8[%c5, %c0_28] : memref<6x128xf32, #tpu.memory_space<vmem>>, vector<1x128xf32>
    %37 = vector.broadcast %36 : vector<1x128xf32> to vector<8x128xf32>
    %38 = arith.addf %35, %37 : vector<8x128xf32>
    %c0_29 = arith.constant 0 : index
    %c0_30 = arith.constant 0 : index
    %39 = vector.load %arg9[%c0_29, %c0_30] : memref<8x128xf32, #tpu.memory_space<vmem>>, vector<8x128xf32>
    tpu.vector_store %arg9[%c0_29, %c0_30], %38 {strides = array<i32>} : memref<8x128xf32, #tpu.memory_space<vmem>>, vector<8x128xf32>,
    return
  }
  func.func @transform_0(%arg0: i32) -> (i32, i32) {
    %c0_i32 = arith.constant 0 : i32
    %c0_i32_0 = arith.constant 0 : i32
    return %arg0, %c0_i32 : i32, i32
  }
  func.func @transform_1(%arg0: i32) -> (i32, i32) {
    %c0_i32 = arith.constant 0 : i32
    %c0_i32_0 = arith.constant 0 : i32
    %c0_i32_1 = arith.constant 0 : i32
    return %c0_i32, %c0_i32_0 : i32, i32
  }
  func.func @transform_2(%arg0: i32) -> (i32, i32) {
    %c0_i32 = arith.constant 0 : i32
    %c0_i32_0 = arith.constant 0 : i32
    %c0_i32_1 = arith.constant 0 : i32
    return %c0_i32, %c0_i32_0 : i32, i32
  }
  func.func @transform_3(%arg0: i32) -> (i32, i32) {
    %c0_i32 = arith.constant 0 : i32
    %c0_i32_0 = arith.constant 0 : i32
    %c0_i32_1 = arith.constant 0 : i32
    return %c0_i32, %c0_i32_0 : i32, i32
  }
  func.func @transform_4(%arg0: i32) -> (i32, i32) {
    %c0_i32 = arith.constant 0 : i32
    %c0_i32_0 = arith.constant 0 : i32
    %c0_i32_1 = arith.constant 0 : i32
    return %c0_i32, %c0_i32_0 : i32, i32
  }
  func.func @transform_5(%arg0: i32) -> (i32, i32) {
    %c0_i32 = arith.constant 0 : i32
    %c0_i32_0 = arith.constant 0 : i32
    %c0_i32_1 = arith.constant 0 : i32
    return %c0_i32, %c0_i32_0 : i32, i32
  }
  func.func @transform_6(%arg0: i32) -> (i32, i32) {
    %c0_i32 = arith.constant 0 : i32
    %c0_i32_0 = arith.constant 0 : i32
    %c0_i32_1 = arith.constant 0 : i32
    return %c0_i32, %c0_i32_0 : i32, i32
  }
  func.func @transform_7(%arg0: i32) -> (i32, i32) {
    %c0_i32 = arith.constant 0 : i32
    %c0_i32_0 = arith.constant 0 : i32
    %c0_i32_1 = arith.constant 0 : i32
    return %c0_i32, %c0_i32_0 : i32, i32
  }
  func.func @transform_8(%arg0: i32) -> (i32, i32) {
    %c0_i32 = arith.constant 0 : i32
    %c0_i32_0 = arith.constant 0 : i32
    return %arg0, %c0_i32 : i32, i32
  }
}

module attributes {stable_mosaic.version = 11 : i64} {
  func.func @_fused_mlp_kernel(%arg0: i32, %arg1: memref<8x128xf32, #tpu.memory_space<vmem>>, %arg2: memref<128x128xf32, #tpu.memory_space<vmem>>, %arg3: memref<128x128xf32, #tpu.memory_space<vmem>>, %arg4: memref<128x128xf32, #tpu.memory_space<vmem>>, %arg5: memref<128x128xf32, #tpu.memory_space<vmem>>, %arg6: memref<128x128xf32, #tpu.memory_space<vmem>>, %arg7: memref<128x128xf32, #tpu.memory_space<vmem>>, %arg8: memref<6x128xf32, #tpu.memory_space<vmem>>, %arg9: memref<8x128xf32, #tpu.memory_space<vmem>>) attributes {dimension_semantics = [#tpu.dimension_semantics<parallel>], iteration_bounds = array<i64: 1>, scalar_prefetch = 0 : i64, scratch_operands = 0 : i64, tpu.core_type = #tpu.core_type<tc>, window_params = [{transform_indices = @transform_0, window_bounds = array<i64: 8, 128>}, {pipeline_mode = #tpu.pipeline_mode<synchronous>, transform_indices = @transform_1, window_bounds = array<i64: 128, 128>}, {pipeline_mode = #tpu.pipeline_mode<synchronous>, transform_indices = @transform_2, window_bounds = array<i64: 128, 128>}, {pipeline_mode = #tpu.pipeline_mode<synchronous>, transform_indices = @transform_3, window_bounds = array<i64: 128, 128>}, {pipeline_mode = #tpu.pipeline_mode<synchronous>, transform_indices = @transform_4, window_bounds = array<i64: 128, 128>}, {pipeline_mode = #tpu.pipeline_mode<synchronous>, transform_indices = @transform_5, window_bounds = array<i64: 128, 128>}, {pipeline_mode = #tpu.pipeline_mode<synchronous>, transform_indices = @transform_6, window_bounds = array<i64: 128, 128>}, {pipeline_mode = #tpu.pipeline_mode<synchronous>, transform_indices = @transform_7, window_bounds = array<i64: 6, 128>}, {transform_indices = @transform_8, window_bounds = array<i64: 8, 128>}]} {
    %c0 = arith.constant 0 : index
    %c0_0 = arith.constant 0 : index
    %0 = vector.load %arg1[%c0, %c0_0] : memref<8x128xf32, #tpu.memory_space<vmem>>, vector<8x128xf32>
    %c0_1 = arith.constant 0 : index
    %c0_2 = arith.constant 0 : index
    %1 = vector.load %arg2[%c0_1, %c0_2] : memref<128x128xf32, #tpu.memory_space<vmem>>, vector<128x128xf32>
    %cst = arith.constant dense<0.000000e+00> : vector<8x128xf32>
    %2 = tpu.matmul %0, %1, %cst {dimension_numbers = #tpu.dot_dimension_numbers<[1], [0], [0], [1], [0, 0, 1, 1], [], []>} : vector<8x128xf32>, vector<128x128xf32>, vector<8x128xf32> -> vector<8x128xf32>
    %c0_3 = arith.constant 0 : index
    %c0_4 = arith.constant 0 : index
    %3 = vector.load %arg8[%c0_3, %c0_4] : memref<6x128xf32, #tpu.memory_space<vmem>>, vector<1x128xf32>
    %4 = vector.broadcast %3 : vector<1x128xf32> to vector<8x128xf32>
    %5 = arith.addf %2, %4 : vector<8x128xf32>
    %cst_5 = arith.constant 0.000000e+00 : f32
    %6 = vector.broadcast %cst_5 : f32 to vector<8x128xf32>
    %7 = arith.maximumf %5, %6 : vector<8x128xf32>
    %c0_6 = arith.constant 0 : index
    %c0_7 = arith.constant 0 : index
    %8 = vector.load %arg3[%c0_6, %c0_7] : memref<128x128xf32, #tpu.memory_space<vmem>>, vector<128x128xf32>
    %cst_8 = arith.constant dense<0.000000e+00> : vector<8x128xf32>
    %9 = tpu.matmul %7, %8, %cst_8 {dimension_numbers = #tpu.dot_dimension_numbers<[1], [0], [0], [1], [0, 0, 1, 1], [], []>} : vector<8x128xf32>, vector<128x128xf32>, vector<8x128xf32> -> vector<8x128xf32>
    %c1 = arith.constant 1 : index
    %c0_9 = arith.constant 0 : index
    %10 = vector.load %arg8[%c1, %c0_9] : memref<6x128xf32, #tpu.memory_space<vmem>>, vector<1x128xf32>
    %11 = vector.broadcast %10 : vector<1x128xf32> to vector<8x128xf32>
    %12 = arith.addf %9, %11 : vector<8x128xf32>
    %cst_10 = arith.constant 0.000000e+00 : f32
    %13 = vector.broadcast %cst_10 : f32 to vector<8x128xf32>
    %14 = arith.maximumf %12, %13 : vector<8x128xf32>
    %c0_11 = arith.constant 0 : index
    %c0_12 = arith.constant 0 : index
    %15 = vector.load %arg4[%c0_11, %c0_12] : memref<128x128xf32, #tpu.memory_space<vmem>>, vector<128x128xf32>
    %cst_13 = arith.constant dense<0.000000e+00> : vector<8x128xf32>
    %16 = tpu.matmul %14, %15, %cst_13 {dimension_numbers = #tpu.dot_dimension_numbers<[1], [0], [0], [1], [0, 0, 1, 1], [], []>} : vector<8x128xf32>, vector<128x128xf32>, vector<8x128xf32> -> vector<8x128xf32>
    %c2 = arith.constant 2 : index
    %c0_14 = arith.constant 0 : index
    %17 = vector.load %arg8[%c2, %c0_14] : memref<6x128xf32, #tpu.memory_space<vmem>>, vector<1x128xf32>
    %18 = vector.broadcast %17 : vector<1x128xf32> to vector<8x128xf32>
    %19 = arith.addf %16, %18 : vector<8x128xf32>
    %c0_15 = arith.constant 0 : index
    %c0_16 = arith.constant 0 : index
    %20 = vector.load %arg5[%c0_15, %c0_16] : memref<128x128xf32, #tpu.memory_space<vmem>>, vector<128x128xf32>
    %cst_17 = arith.constant dense<0.000000e+00> : vector<8x128xf32>
    %21 = tpu.matmul %19, %20, %cst_17 {dimension_numbers = #tpu.dot_dimension_numbers<[1], [0], [0], [1], [0, 0, 1, 1], [], []>} : vector<8x128xf32>, vector<128x128xf32>, vector<8x128xf32> -> vector<8x128xf32>
    %c3 = arith.constant 3 : index
    %c0_18 = arith.constant 0 : index
    %22 = vector.load %arg8[%c3, %c0_18] : memref<6x128xf32, #tpu.memory_space<vmem>>, vector<1x128xf32>
    %23 = vector.broadcast %22 : vector<1x128xf32> to vector<8x128xf32>
    %24 = arith.addf %21, %23 : vector<8x128xf32>
    %cst_19 = arith.constant 0.000000e+00 : f32
    %25 = vector.broadcast %cst_19 : f32 to vector<8x128xf32>
    %26 = arith.maximumf %24, %25 : vector<8x128xf32>
    %c0_20 = arith.constant 0 : index
    %c0_21 = arith.constant 0 : index
    %27 = vector.load %arg6[%c0_20, %c0_21] : memref<128x128xf32, #tpu.memory_space<vmem>>, vector<128x128xf32>
    %cst_22 = arith.constant dense<0.000000e+00> : vector<8x128xf32>
    %28 = tpu.matmul %26, %27, %cst_22 {dimension_numbers = #tpu.dot_dimension_numbers<[1], [0], [0], [1], [0, 0, 1, 1], [], []>} : vector<8x128xf32>, vector<128x128xf32>, vector<8x128xf32> -> vector<8x128xf32>
    %c4 = arith.constant 4 : index
    %c0_23 = arith.constant 0 : index
    %29 = vector.load %arg8[%c4, %c0_23] : memref<6x128xf32, #tpu.memory_space<vmem>>, vector<1x128xf32>
    %30 = vector.broadcast %29 : vector<1x128xf32> to vector<8x128xf32>
    %31 = arith.addf %28, %30 : vector<8x128xf32>
    %cst_24 = arith.constant 0.000000e+00 : f32
    %32 = vector.broadcast %cst_24 : f32 to vector<8x128xf32>
    %33 = arith.maximumf %31, %32 : vector<8x128xf32>
    %c0_25 = arith.constant 0 : index
    %c0_26 = arith.constant 0 : index
    %34 = vector.load %arg7[%c0_25, %c0_26] : memref<128x128xf32, #tpu.memory_space<vmem>>, vector<128x128xf32>
    %cst_27 = arith.constant dense<0.000000e+00> : vector<8x128xf32>
    %35 = tpu.matmul %33, %34, %cst_27 {dimension_numbers = #tpu.dot_dimension_numbers<[1], [0], [0], [1], [0, 0, 1, 1], [], []>} : vector<8x128xf32>, vector<128x128xf32>, vector<8x128xf32> -> vector<8x128xf32>
    %c5 = arith.constant 5 : index
    %c0_28 = arith.constant 0 : index
    %36 = vector.load %arg8[%c5, %c0_28] : memref<6x128xf32, #tpu.memory_space<vmem>>, vector<1x128xf32>
    %37 = vector.broadcast %36 : vector<1x128xf32> to vector<8x128xf32>
    %38 = arith.addf %35, %37 : vector<8x128xf32>
    %c0_29 = arith.constant 0 : index
    %c0_30 = arith.constant 0 : index
    %39 = vector.load %arg9[%c0_29, %c0_30] : memref<8x128xf32, #tpu.memory_space<vmem>>, vector<8x128xf32>
    tpu.vector_store %arg9[%c0_29, %c0_30], %38 {strides = array<i32>} : memref<8x128xf32, #tpu.memory_space<vmem>>, vector<8x128xf32>,
    return
  }
  func.func @transform_0(%arg0: i32) -> (i32, i32) {
    %c0_i32 = arith.constant 0 : i32
    %c0_i32_0 = arith.constant 0 : i32
    return %arg0, %c0_i32 : i32, i32
  }
  func.func @transform_1(%arg0: i32) -> (i32, i32) {
    %c0_i32 = arith.constant 0 : i32
    %c0_i32_0 = arith.constant 0 : i32
    %c0_i32_1 = arith.constant 0 : i32
    return %c0_i32, %c0_i32_0 : i32, i32
  }
  func.func @transform_2(%arg0: i32) -> (i32, i32) {
    %c0_i32 = arith.constant 0 : i32
    %c0_i32_0 = arith.constant 0 : i32
    %c0_i32_1 = arith.constant 0 : i32
    return %c0_i32, %c0_i32_0 : i32, i32
  }
  func.func @transform_3(%arg0: i32) -> (i32, i32) {
    %c0_i32 = arith.constant 0 : i32
    %c0_i32_0 = arith.constant 0 : i32
    %c0_i32_1 = arith.constant 0 : i32
    return %c0_i32, %c0_i32_0 : i32, i32
  }
  func.func @transform_4(%arg0: i32) -> (i32, i32) {
    %c0_i32 = arith.constant 0 : i32
    %c0_i32_0 = arith.constant 0 : i32
    %c0_i32_1 = arith.constant 0 : i32
    return %c0_i32, %c0_i32_0 : i32, i32
  }
  func.func @transform_5(%arg0: i32) -> (i32, i32) {
    %c0_i32 = arith.constant 0 : i32
    %c0_i32_0 = arith.constant 0 : i32
    %c0_i32_1 = arith.constant 0 : i32
    return %c0_i32, %c0_i32_0 : i32, i32
  }
  func.func @transform_6(%arg0: i32) -> (i32, i32) {
    %c0_i32 = arith.constant 0 : i32
    %c0_i32_0 = arith.constant 0 : i32
    %c0_i32_1 = arith.constant 0 : i32
    return %c0_i32, %c0_i32_0 : i32, i32
  }
  func.func @transform_7(%arg0: i32) -> (i32, i32) {
    %c0_i32 = arith.constant 0 : i32
    %c0_i32_0 = arith.constant 0 : i32
    %c0_i32_1 = arith.constant 0 : i32
    return %c0_i32, %c0_i32_0 : i32, i32
  }
  func.func @transform_8(%arg0: i32) -> (i32, i32) {
    %c0_i32 = arith.constant 0 : i32
    %c0_i32_0 = arith.constant 0 : i32
    return %arg0, %c0_i32 : i32, i32
  }
}

</mosaic_0001>

<llo_original>
// kernel: tpu_custom_call.1
$region0: #{tpu_custom_call.1}
  #allocation0 [shape = 'u32[]', space=smem, size = 0x4, offset = 0x4, fixed_abs, tag = 'smem constant byte address 0x4 - core index']
  #allocation1 [shape = 'u32[144,128]{1,0:T(1,128)}', space=vmem, size = 0x12000, scoped, tag = 'internal scratch']
  %s0 = inlined_call_operand.hbm [shape: f32[8,128], index: 0, kind: input, shape index: {}]
  %s1 = inlined_call_operand.hbm [shape: f32[128,128], index: 1, kind: input, shape index: {}]
  %s2 = inlined_call_operand.hbm [shape: f32[128,128], index: 2, kind: input, shape index: {}]
  %s3 = inlined_call_operand.hbm [shape: f32[128,128], index: 3, kind: input, shape index: {}]
  %s4 = inlined_call_operand.hbm [shape: f32[128,128], index: 4, kind: input, shape index: {}]
  %s5 = inlined_call_operand.hbm [shape: f32[128,128], index: 5, kind: input, shape index: {}]
  %s6 = inlined_call_operand.hbm [shape: f32[128,128], index: 6, kind: input, shape index: {}]
  %s7 = inlined_call_operand.vmem [shape: f32[6,128], index: 7, kind: input, shape index: {}]
  %s8 = inlined_call_operand.hbm [shape: f32[8,128], index: 8, kind: output, shape index: {}]
  %s9 = sld [smem:[#allocation0]]
  $region70: #{tpu_custom_call.1} parent=0
    _
  %s11 = ssub.s32 1, %s9
  %s12 = scalar_select 0, %s11, %s9
  $region1: #{tpu_custom_call.1} parent=0
    #allocation2 [shape = 'u8[4096]{0}', space=vmem, size = 0x1000, scoped, tag = 'input window, operand 0, single buffered']
    #allocation3 [shape = 's32[1]{0}', space=sflag, size = 0x4, scoped, tag = 'scoped memory for tpu_custom_call.1']
    #allocation4 [shape = 's32[1]{0}', space=sflag, size = 0x4, scoped, tag = 'scoped memory for tpu_custom_call.1']
    #allocation5 [shape = 'u8[65536]{0}', space=vmem, size = 0x10000, scoped, tag = 'input window, operand 1, single buffered']
    #allocation6 [shape = 's32[1]{0}', space=sflag, size = 0x4, scoped, tag = 'scoped memory for tpu_custom_call.1']
    #allocation7 [shape = 'u8[65536]{0}', space=vmem, size = 0x10000, scoped, tag = 'input window, operand 2, single buffered']
    #allocation8 [shape = 'u8[65536]{0}', space=vmem, size = 0x10000, scoped, tag = 'input window, operand 3, single buffered']
    #allocation9 [shape = 's32[1]{0}', space=sflag, size = 0x4, scoped, tag = 'scoped memory for tpu_custom_call.1']
    #allocation10 [shape = 'u8[65536]{0}', space=vmem, size = 0x10000, scoped, tag = 'input window, operand 4, single buffered']
    #allocation11 [shape = 'u8[65536]{0}', space=vmem, size = 0x10000, scoped, tag = 'input window, operand 5, single buffered']
    #allocation12 [shape = 's32[1]{0}', space=sflag, size = 0x4, scoped, tag = 'scoped memory for tpu_custom_call.1']
    #allocation13 [shape = 'u8[65536]{0}', space=vmem, size = 0x10000, scoped, tag = 'input window, operand 6, single buffered']
    #allocation14 [shape = 'u8[4096]{0}', space=vmem, size = 0x1000, scoped, tag = 'output window, operand 0, single buffered']
    %13 = vsyncpa [#allocation3], 0
    %14 = vsyncpa [#allocation6], 0
    %15 = vsyncpa [#allocation9], 0
    %16 = vsyncpa [#allocation12], 0
    %17 = vsyncpa [#allocation4], 0
    // Predicated region
    $region2: #{tpu_custom_call.1} parent=1 // pred_check
      _
    $region3: #{tpu_custom_call.1} parent=1 // pred_check_branch
      %19 = sbr.rel (0) target = $region5
    $region4: #{tpu_custom_call.1} parent=1 // pred_region
      %s21 = ssub.s32 128, 128
      %22 = vsyncadd [#allocation3], %s21
      %s24 = sshll.u32 [#allocation2], 4
      %s25 = int_to_ptr.vmem [resolvable:$true] %s24
      %27 = dma.hbm_to_vmem [thread:$0]  %s0, 128, %s25, [#allocation3]
    $region5: #{tpu_custom_call.1} parent=1 // pred_fallthru
      _
    // Predicated region
    $region6: #{tpu_custom_call.1} parent=1 // pred_check
      _
    $region7: #{tpu_custom_call.1} parent=1 // pred_check_branch
      %29 = sbr.rel (0) target = $region9
    $region8: #{tpu_custom_call.1} parent=1 // pred_region
      %s31 = ssub.s32 2048, 2048
      %32 = vsyncadd [#allocation6], %s31
      %s33 = sshll.u32 [#allocation5], 4
      %s34 = int_to_ptr.vmem [resolvable:$true] %s33
      %39 = dma.hbm_to_vmem [thread:$0]  %s1, 2048, %s34, [#allocation6], 128, 128, 8
    $region9: #{tpu_custom_call.1} parent=1 // pred_fallthru
      _
    // Predicated region
    $region10: #{tpu_custom_call.1} parent=1 // pred_check
      _
    $region11: #{tpu_custom_call.1} parent=1 // pred_check_branch
      %41 = sbr.rel (0) target = $region13
    $region12: #{tpu_custom_call.1} parent=1 // pred_region
      %s43 = ssub.s32 2048, 2048
      %44 = vsyncadd [#allocation6], %s43
      %s45 = sshll.u32 [#allocation7], 4
      %s46 = int_to_ptr.vmem [resolvable:$true] %s45
      %51 = dma.hbm_to_vmem [thread:$0]  %s2, 2048, %s46, [#allocation6], 128, 128, 8
    $region13: #{tpu_custom_call.1} parent=1 // pred_fallthru
      _
    // Predicated region
    $region14: #{tpu_custom_call.1} parent=1 // pred_check
      _
    $region15: #{tpu_custom_call.1} parent=1 // pred_check_branch
      %53 = sbr.rel (0) target = $region17
    $region16: #{tpu_custom_call.1} parent=1 // pred_region
      %s55 = ssub.s32 2048, 2048
      %56 = vsyncadd [#allocation9], %s55
      %s57 = sshll.u32 [#allocation8], 4
      %s58 = int_to_ptr.vmem [resolvable:$true] %s57
      %63 = dma.hbm_to_vmem [thread:$0]  %s3, 2048, %s58, [#allocation9], 128, 128, 8
    $region17: #{tpu_custom_call.1} parent=1 // pred_fallthru
      _
    // Predicated region
    $region18: #{tpu_custom_call.1} parent=1 // pred_check
      _
    $region19: #{tpu_custom_call.1} parent=1 // pred_check_branch
      %65 = sbr.rel (0) target = $region21
    $region20: #{tpu_custom_call.1} parent=1 // pred_region
      %s67 = ssub.s32 2048, 2048
      %68 = vsyncadd [#allocation9], %s67
      %s69 = sshll.u32 [#allocation10], 4
      %s70 = int_to_ptr.vmem [resolvable:$true] %s69
      %75 = dma.hbm_to_vmem [thread:$0]  %s4, 2048, %s70, [#allocation9], 128, 128, 8
    $region21: #{tpu_custom_call.1} parent=1 // pred_fallthru
      _
    // Predicated region
    $region22: #{tpu_custom_call.1} parent=1 // pred_check
      _
    $region23: #{tpu_custom_call.1} parent=1 // pred_check_branch
      %77 = sbr.rel (0) target = $region25
    $region24: #{tpu_custom_call.1} parent=1 // pred_region
      %s79 = ssub.s32 2048, 2048
      %80 = vsyncadd [#allocation12], %s79
      %s81 = sshll.u32 [#allocation11], 4
      %s82 = int_to_ptr.vmem [resolvable:$true] %s81
      %87 = dma.hbm_to_vmem [thread:$0]  %s5, 2048, %s82, [#allocation12], 128, 128, 8
    $region25: #{tpu_custom_call.1} parent=1 // pred_fallthru
      _
    // Predicated region
    $region26: #{tpu_custom_call.1} parent=1 // pred_check
      _
    $region27: #{tpu_custom_call.1} parent=1 // pred_check_branch
      %89 = sbr.rel (0) target = $region29
    $region28: #{tpu_custom_call.1} parent=1 // pred_region
      %s91 = ssub.s32 2048, 2048
      %92 = vsyncadd [#allocation12], %s91
      %s93 = sshll.u32 [#allocation13], 4
      %s94 = int_to_ptr.vmem [resolvable:$true] %s93
      %99 = dma.hbm_to_vmem [thread:$0]  %s6, 2048, %s94, [#allocation12], 128, 128, 8
    $region29: #{tpu_custom_call.1} parent=1 // pred_fallthru
      _
    // Predicated region
    $region30: #{tpu_custom_call.1} parent=1 // pred_check
      _
    $region31: #{tpu_custom_call.1} parent=1 // pred_check_branch
      %101 = sbr.rel (0) target = $region33
    $region32: #{tpu_custom_call.1} parent=1 // pred_region
      _
    $region33: #{tpu_custom_call.1} parent=1 // pred_fallthru
      _
    // Predicated region
    $region34: #{tpu_custom_call.1} parent=1 // pred_check
      _
    $region35: #{tpu_custom_call.1} parent=1 // pred_check_branch
      %103 = sbr.rel (0) target = $region37
    $region36: #{tpu_custom_call.1} parent=1 // pred_region
      %104 = dma.done [#allocation3], 128
    $region37: #{tpu_custom_call.1} parent=1 // pred_fallthru
      _
    // Predicated region
    $region38: #{tpu_custom_call.1} parent=1 // pred_check
      _
    $region39: #{tpu_custom_call.1} parent=1 // pred_check_branch
      %106 = sbr.rel (0) target = $region41
    $region40: #{tpu_custom_call.1} parent=1 // pred_region
      %107 = dma.done [#allocation6], 2048
    $region41: #{tpu_custom_call.1} parent=1 // pred_fallthru
      _
    // Predicated region
    $region42: #{tpu_custom_call.1} parent=1 // pred_check
      _
    $region43: #{tpu_custom_call.1} parent=1 // pred_check_branch
      %109 = sbr.rel (0) target = $region45
    $region44: #{tpu_custom_call.1} parent=1 // pred_region
      %110 = dma.done [#allocation6], 2048
    $region45: #{tpu_custom_call.1} parent=1 // pred_fallthru
      _
    // Predicated region
    $region46: #{tpu_custom_call.1} parent=1 // pred_check
      _
    $region47: #{tpu_custom_call.1} parent=1 // pred_check_branch
      %112 = sbr.rel (0) target = $region49
    $region48: #{tpu_custom_call.1} parent=1 // pred_region
      %113 = dma.done [#allocation9], 2048
    $region49: #{tpu_custom_call.1} parent=1 // pred_fallthru
      _
    // Predicated region
    $region50: #{tpu_custom_call.1} parent=1 // pred_check
      _
    $region51: #{tpu_custom_call.1} parent=1 // pred_check_branch
      %115 = sbr.rel (0) target = $region53
    $region52: #{tpu_custom_call.1} parent=1 // pred_region
      %116 = dma.done [#allocation9], 2048
    $region53: #{tpu_custom_call.1} parent=1 // pred_fallthru
      _
    // Predicated region
    $region54: #{tpu_custom_call.1} parent=1 // pred_check
      _
    $region55: #{tpu_custom_call.1} parent=1 // pred_check_branch
      %118 = sbr.rel (0) target = $region57
    $region56: #{tpu_custom_call.1} parent=1 // pred_region
      %119 = dma.done [#allocation12], 2048
    $region57: #{tpu_custom_call.1} parent=1 // pred_fallthru
      _
    // Predicated region
    $region58: #{tpu_custom_call.1} parent=1 // pred_check
      _
    $region59: #{tpu_custom_call.1} parent=1 // pred_check_branch
      %121 = sbr.rel (0) target = $region61
    $region60: #{tpu_custom_call.1} parent=1 // pred_region
      %122 = dma.done [#allocation12], 2048
    $region61: #{tpu_custom_call.1} parent=1 // pred_fallthru
      _
    %v123 = vld [vmem:[#allocation2] sm:$0xff]
    %v124 = vld [vmem:[#allocation5] sm:$0xff]
    %v125 = vld [vmem:[#allocation5 + $0x8] sm:$0xff]
    %v126 = vld [vmem:[#allocation5 + $0x10] sm:$0xff]
    %v127 = vld [vmem:[#allocation5 + $0x18] sm:$0xff]
    %v128 = vld [vmem:[#allocation5 + $0x20] sm:$0xff]
    %v129 = vld [vmem:[#allocation5 + $0x28] sm:$0xff]
    %v130 = vld [vmem:[#allocation5 + $0x30] sm:$0xff]
    %v131 = vld [vmem:[#allocation5 + $0x38] sm:$0xff]
    %v132 = vld [vmem:[#allocation5 + $0x40] sm:$0xff]
    %v133 = vld [vmem:[#allocation5 + $0x48] sm:$0xff]
    %v134 = vld [vmem:[#allocation5 + $0x50] sm:$0xff]
    %v135 = vld [vmem:[#allocation5 + $0x58] sm:$0xff]
    %v136 = vld [vmem:[#allocation5 + $0x60] sm:$0xff]
    %v137 = vld [vmem:[#allocation5 + $0x68] sm:$0xff]
    %v138 = vld [vmem:[#allocation5 + $0x70] sm:$0xff]
    %v139 = vld [vmem:[#allocation5 + $0x78] sm:$0xff]
    %v140 = vld [vmem:[%s7] sm:$0x1]
    %v141 = vlaneseq
    %v142 = vshrl.u32 %v141, 7
    %v143 = vsub.s32 0, %v142
    %v144 = vrot.slane %v140, %v143
    %145 = vmatprep.subr.mxu0 0.0
    %146 = vmatpush1.msra.mxu0 %v124
    %147 = vmatprep.subr.mxu0 0.0
    %148 = vmatpush1.msra.mxu0 %v125
    %149 = vmatprep.subr.mxu0 0.0
    %150 = vmatpush1.msra.mxu0 %v126
    %151 = vmatprep.subr.mxu0 0.0
    %152 = vmatpush1.msra.mxu0 %v127
    %153 = vmatprep.subr.mxu0 0.0
    %154 = vmatpush1.msra.mxu0 %v128
    %155 = vmatprep.subr.mxu0 0.0
    %156 = vmatpush1.msra.mxu0 %v129
    %157 = vmatprep.subr.mxu0 0.0
    %158 = vmatpush1.msra.mxu0 %v130
    %159 = vmatprep.subr.mxu0 0.0
    %160 = vmatpush1.msra.mxu0 %v131
    %161 = vmatprep.subr.mxu0 0.0
    %162 = vmatpush1.msra.mxu0 %v132
    %163 = vmatprep.subr.mxu0 0.0
    %164 = vmatpush1.msra.mxu0 %v133
    %165 = vmatprep.subr.mxu0 0.0
    %166 = vmatpush1.msra.mxu0 %v134
    %167 = vmatprep.subr.mxu0 0.0
    %168 = vmatpush1.msra.mxu0 %v135
    %169 = vmatprep.subr.mxu0 0.0
    %170 = vmatpush1.msra.mxu0 %v136
    %171 = vmatprep.subr.mxu0 0.0
    %172 = vmatpush1.msra.mxu0 %v137
    %173 = vmatprep.subr.mxu0 0.0
    %174 = vmatpush1.msra.mxu0 %v138
    %175 = vmatprep.subr.mxu0 0.0
    %176 = vmatpush1.msra.mxu0 %v139
    %177 = vmatprep.subr.mxu0 0.0
    %178 = vmatpush1.msra.mxu0 0.0
    %179 = vmatprep.subr.mxu0 0.0
    %180 = vmatpush1.msra.mxu0 0.0
    %181 = vmatprep.subr.mxu0 0.0
    %182 = vmatpush1.msra.mxu0 0.0
    %183 = vmatprep.subr.mxu0 0.0
    %184 = vmatpush1.msra.mxu0 0.0
    %185 = vmatprep.subr.mxu0 0.0
    %186 = vmatpush1.msra.mxu0 0.0
    %187 = vmatprep.subr.mxu0 0.0
    %188 = vmatpush1.msra.mxu0 0.0
    %189 = vmatprep.subr.mxu0 0.0
    %190 = vmatpush1.msra.mxu0 0.0
    %191 = vmatprep.subr.mxu0 0.0
    %192 = vmatpush1.msra.mxu0 0.0
    %193 = vmatprep.subr.mxu0 0.0
    %194 = vmatpush1.msra.mxu0 0.0
    %195 = vmatprep.subr.mxu0 0.0
    %196 = vmatpush1.msra.mxu0 0.0
    %197 = vmatprep.subr.mxu0 0.0
    %198 = vmatpush1.msra.mxu0 0.0
    %199 = vmatprep.subr.mxu0 0.0
    %200 = vmatpush1.msra.mxu0 0.0
    %201 = vmatprep.subr.mxu0 0.0
    %202 = vmatpush1.msra.mxu0 0.0
    %203 = vmatprep.subr.mxu0 0.0
    %204 = vmatpush1.msra.mxu0 0.0
    %205 = vmatprep.subr.mxu0 0.0
    %206 = vmatpush1.msra.mxu0 0.0
    %207 = vmatprep.subr.mxu0 0.0
    %208 = vmatpush1.msra.mxu0 0.0
    %209 = vmatprep.mubr.f32.mxu0 0.0
    %210 = vmatmul.mubr.f32.gmra.mrb[0].mxu0 %v123
    %v211 = vpop.f32.mrb[0].mxu0
    %v212 = vadd.f32 %v144, %v211
    %v213 = vpop.f32.mrb[0].mxu0
    %214 = vdwg.mxu0
    %v215 = vmax.f32 %v212, 0.0
    %v216 = vld [vmem:[#allocation7] sm:$0xff]
    %v217 = vld [vmem:[#allocation7 + $0x8] sm:$0xff]
    %v218 = vld [vmem:[#allocation7 + $0x10] sm:$0xff]
    %v219 = vld [vmem:[#allocation7 + $0x18] sm:$0xff]
    %v220 = vld [vmem:[#allocation7 + $0x20] sm:$0xff]
    %v221 = vld [vmem:[#allocation7 + $0x28] sm:$0xff]
    %v222 = vld [vmem:[#allocation7 + $0x30] sm:$0xff]
    %v223 = vld [vmem:[#allocation7 + $0x38] sm:$0xff]
    %v224 = vld [vmem:[#allocation7 + $0x40] sm:$0xff]
    %v225 = vld [vmem:[#allocation7 + $0x48] sm:$0xff]
    %v226 = vld [vmem:[#allocation7 + $0x50] sm:$0xff]
    %v227 = vld [vmem:[#allocation7 + $0x58] sm:$0xff]
    %v228 = vld [vmem:[#allocation7 + $0x60] sm:$0xff]
    %v229 = vld [vmem:[#allocation7 + $0x68] sm:$0xff]
    %v230 = vld [vmem:[#allocation7 + $0x70] sm:$0xff]
    %v231 = vld [vmem:[#allocation7 + $0x78] sm:$0xff]
    %v232 = vld [vmem:[%s7 + $0x1] sm:$0x1]
    %v233 = vlaneseq
    %v234 = vshrl.u32 %v233, 7
    %v235 = vsub.s32 0, %v234
    %v236 = vrot.slane %v232, %v235
    %237 = vmatprep.subr.mxu0 0.0
    %238 = vmatpush1.msra.mxu0 %v216
    %239 = vmatprep.subr.mxu0 0.0
    %240 = vmatpush1.msra.mxu0 %v217
    %241 = vmatprep.subr.mxu0 0.0
    %242 = vmatpush1.msra.mxu0 %v218
    %243 = vmatprep.subr.mxu0 0.0
    %244 = vmatpush1.msra.mxu0 %v219
    %245 = vmatprep.subr.mxu0 0.0
    %246 = vmatpush1.msra.mxu0 %v220
    %247 = vmatprep.subr.mxu0 0.0
    %248 = vmatpush1.msra.mxu0 %v221
    %249 = vmatprep.subr.mxu0 0.0
    %250 = vmatpush1.msra.mxu0 %v222
    %251 = vmatprep.subr.mxu0 0.0
    %252 = vmatpush1.msra.mxu0 %v223
    %253 = vmatprep.subr.mxu0 0.0
    %254 = vmatpush1.msra.mxu0 %v224
    %255 = vmatprep.subr.mxu0 0.0
    %256 = vmatpush1.msra.mxu0 %v225
    %257 = vmatprep.subr.mxu0 0.0
    %258 = vmatpush1.msra.mxu0 %v226
    %259 = vmatprep.subr.mxu0 0.0
    %260 = vmatpush1.msra.mxu0 %v227
    %261 = vmatprep.subr.mxu0 0.0
    %262 = vmatpush1.msra.mxu0 %v228
    %263 = vmatprep.subr.mxu0 0.0
    %264 = vmatpush1.msra.mxu0 %v229
    %265 = vmatprep.subr.mxu0 0.0
    %266 = vmatpush1.msra.mxu0 %v230
    %267 = vmatprep.subr.mxu0 0.0
    %268 = vmatpush1.msra.mxu0 %v231
    %269 = vmatprep.subr.mxu0 0.0
    %270 = vmatpush1.msra.mxu0 0.0
    %271 = vmatprep.subr.mxu0 0.0
    %272 = vmatpush1.msra.mxu0 0.0
    %273 = vmatprep.subr.mxu0 0.0
    %274 = vmatpush1.msra.mxu0 0.0
    %275 = vmatprep.subr.mxu0 0.0
    %276 = vmatpush1.msra.mxu0 0.0
    %277 = vmatprep.subr.mxu0 0.0
    %278 = vmatpush1.msra.mxu0 0.0
    %279 = vmatprep.subr.mxu0 0.0
    %280 = vmatpush1.msra.mxu0 0.0
    %281 = vmatprep.subr.mxu0 0.0
    %282 = vmatpush1.msra.mxu0 0.0
    %283 = vmatprep.subr.mxu0 0.0
    %284 = vmatpush1.msra.mxu0 0.0
    %285 = vmatprep.subr.mxu0 0.0
    %286 = vmatpush1.msra.mxu0 0.0
    %287 = vmatprep.subr.mxu0 0.0
    %288 = vmatpush1.msra.mxu0 0.0
    %289 = vmatprep.subr.mxu0 0.0
    %290 = vmatpush1.msra.mxu0 0.0
    %291 = vmatprep.subr.mxu0 0.0
    %292 = vmatpush1.msra.mxu0 0.0
    %293 = vmatprep.subr.mxu0 0.0
    %294 = vmatpush1.msra.mxu0 0.0
    %295 = vmatprep.subr.mxu0 0.0
    %296 = vmatpush1.msra.mxu0 0.0
    %297 = vmatprep.subr.mxu0 0.0
    %298 = vmatpush1.msra.mxu0 0.0
    %299 = vmatprep.subr.mxu0 0.0
    %300 = vmatpush1.msra.mxu0 0.0
    %301 = vmatprep.mubr.f32.mxu0 0.0
    %302 = vmatmul.mubr.f32.gmra.mrb[0].mxu0 %v215
    %v303 = vpop.f32.mrb[0].mxu0
    %v304 = vadd.f32 %v236, %v303
    %v305 = vpop.f32.mrb[0].mxu0
    %306 = vdwg.mxu0
    %v307 = vmax.f32 %v304, 0.0
    %v308 = vld [vmem:[#allocation8] sm:$0xff]
    %v309 = vld [vmem:[#allocation8 + $0x8] sm:$0xff]
    %v310 = vld [vmem:[#allocation8 + $0x10] sm:$0xff]
    %v311 = vld [vmem:[#allocation8 + $0x18] sm:$0xff]
    %v312 = vld [vmem:[#allocation8 + $0x20] sm:$0xff]
    %v313 = vld [vmem:[#allocation8 + $0x28] sm:$0xff]
    %v314 = vld [vmem:[#allocation8 + $0x30] sm:$0xff]
    %v315 = vld [vmem:[#allocation8 + $0x38] sm:$0xff]
    %v316 = vld [vmem:[#allocation8 + $0x40] sm:$0xff]
    %v317 = vld [vmem:[#allocation8 + $0x48] sm:$0xff]
    %v318 = vld [vmem:[#allocation8 + $0x50] sm:$0xff]
    %v319 = vld [vmem:[#allocation8 + $0x58] sm:$0xff]
    %v320 = vld [vmem:[#allocation8 + $0x60] sm:$0xff]
    %v321 = vld [vmem:[#allocation8 + $0x68] sm:$0xff]
    %v322 = vld [vmem:[#allocation8 + $0x70] sm:$0xff]
    %v323 = vld [vmem:[#allocation8 + $0x78] sm:$0xff]
    %v324 = vld [vmem:[%s7 + $0x2] sm:$0x1]
    %v325 = vlaneseq
    %v326 = vshrl.u32 %v325, 7
    %v327 = vsub.s32 0, %v326
    %v328 = vrot.slane %v324, %v327
    %329 = vmatprep.subr.mxu0 0.0
    %330 = vmatpush1.msra.mxu0 %v308
    %331 = vmatprep.subr.mxu0 0.0
    %332 = vmatpush1.msra.mxu0 %v309
    %333 = vmatprep.subr.mxu0 0.0
    %334 = vmatpush1.msra.mxu0 %v310
    %335 = vmatprep.subr.mxu0 0.0
    %336 = vmatpush1.msra.mxu0 %v311
    %337 = vmatprep.subr.mxu0 0.0
    %338 = vmatpush1.msra.mxu0 %v312
    %339 = vmatprep.subr.mxu0 0.0
    %340 = vmatpush1.msra.mxu0 %v313
    %341 = vmatprep.subr.mxu0 0.0
    %342 = vmatpush1.msra.mxu0 %v314
    %343 = vmatprep.subr.mxu0 0.0
    %344 = vmatpush1.msra.mxu0 %v315
    %345 = vmatprep.subr.mxu0 0.0
    %346 = vmatpush1.msra.mxu0 %v316
    %347 = vmatprep.subr.mxu0 0.0
    %348 = vmatpush1.msra.mxu0 %v317
    %349 = vmatprep.subr.mxu0 0.0
    %350 = vmatpush1.msra.mxu0 %v318
    %351 = vmatprep.subr.mxu0 0.0
    %352 = vmatpush1.msra.mxu0 %v319
    %353 = vmatprep.subr.mxu0 0.0
    %354 = vmatpush1.msra.mxu0 %v320
    %355 = vmatprep.subr.mxu0 0.0
    %356 = vmatpush1.msra.mxu0 %v321
    %357 = vmatprep.subr.mxu0 0.0
    %358 = vmatpush1.msra.mxu0 %v322
    %359 = vmatprep.subr.mxu0 0.0
    %360 = vmatpush1.msra.mxu0 %v323
    %361 = vmatprep.subr.mxu0 0.0
    %362 = vmatpush1.msra.mxu0 0.0
    %363 = vmatprep.subr.mxu0 0.0
    %364 = vmatpush1.msra.mxu0 0.0
    %365 = vmatprep.subr.mxu0 0.0
    %366 = vmatpush1.msra.mxu0 0.0
    %367 = vmatprep.subr.mxu0 0.0
    %368 = vmatpush1.msra.mxu0 0.0
    %369 = vmatprep.subr.mxu0 0.0
    %370 = vmatpush1.msra.mxu0 0.0
    %371 = vmatprep.subr.mxu0 0.0
    %372 = vmatpush1.msra.mxu0 0.0
    %373 = vmatprep.subr.mxu0 0.0
    %374 = vmatpush1.msra.mxu0 0.0
    %375 = vmatprep.subr.mxu0 0.0
    %376 = vmatpush1.msra.mxu0 0.0
    %377 = vmatprep.subr.mxu0 0.0
    %378 = vmatpush1.msra.mxu0 0.0
    %379 = vmatprep.subr.mxu0 0.0
    %380 = vmatpush1.msra.mxu0 0.0
    %381 = vmatprep.subr.mxu0 0.0
    %382 = vmatpush1.msra.mxu0 0.0
    %383 = vmatprep.subr.mxu0 0.0
    %384 = vmatpush1.msra.mxu0 0.0
    %385 = vmatprep.subr.mxu0 0.0
    %386 = vmatpush1.msra.mxu0 0.0
    %387 = vmatprep.subr.mxu0 0.0
    %388 = vmatpush1.msra.mxu0 0.0
    %389 = vmatprep.subr.mxu0 0.0
    %390 = vmatpush1.msra.mxu0 0.0
    %391 = vmatprep.subr.mxu0 0.0
    %392 = vmatpush1.msra.mxu0 0.0
    %393 = vmatprep.mubr.f32.mxu0 0.0
    %394 = vmatmul.mubr.f32.gmra.mrb[0].mxu0 %v307
    %v395 = vpop.f32.mrb[0].mxu0
    %v396 = vadd.f32 %v328, %v395
    %v397 = vpop.f32.mrb[0].mxu0
    %398 = vdwg.mxu0
    %v399 = vld [vmem:[#allocation10] sm:$0xff]
    %v400 = vld [vmem:[#allocation10 + $0x8] sm:$0xff]
    %v401 = vld [vmem:[#allocation10 + $0x10] sm:$0xff]
    %v402 = vld [vmem:[#allocation10 + $0x18] sm:$0xff]
    %v403 = vld [vmem:[#allocation10 + $0x20] sm:$0xff]
    %v404 = vld [vmem:[#allocation10 + $0x28] sm:$0xff]
    %v405 = vld [vmem:[#allocation10 + $0x30] sm:$0xff]
    %v406 = vld [vmem:[#allocation10 + $0x38] sm:$0xff]
    %v407 = vld [vmem:[#allocation10 + $0x40] sm:$0xff]
    %v408 = vld [vmem:[#allocation10 + $0x48] sm:$0xff]
    %v409 = vld [vmem:[#allocation10 + $0x50] sm:$0xff]
    %v410 = vld [vmem:[#allocation10 + $0x58] sm:$0xff]
    %v411 = vld [vmem:[#allocation10 + $0x60] sm:$0xff]
    %v412 = vld [vmem:[#allocation10 + $0x68] sm:$0xff]
    %v413 = vld [vmem:[#allocation10 + $0x70] sm:$0xff]
    %v414 = vld [vmem:[#allocation10 + $0x78] sm:$0xff]
    %v415 = vld [vmem:[%s7 + $0x3] sm:$0x1]
    %v416 = vlaneseq
    %v417 = vshrl.u32 %v416, 7
    %v418 = vsub.s32 0, %v417
    %v419 = vrot.slane %v415, %v418
    %420 = vmatprep.subr.mxu0 0.0
    %421 = vmatpush1.msra.mxu0 %v399
    %422 = vmatprep.subr.mxu0 0.0
    %423 = vmatpush1.msra.mxu0 %v400
    %424 = vmatprep.subr.mxu0 0.0
    %425 = vmatpush1.msra.mxu0 %v401
    %426 = vmatprep.subr.mxu0 0.0
    %427 = vmatpush1.msra.mxu0 %v402
    %428 = vmatprep.subr.mxu0 0.0
    %429 = vmatpush1.msra.mxu0 %v403
    %430 = vmatprep.subr.mxu0 0.0
    %431 = vmatpush1.msra.mxu0 %v404
    %432 = vmatprep.subr.mxu0 0.0
    %433 = vmatpush1.msra.mxu0 %v405
    %434 = vmatprep.subr.mxu0 0.0
    %435 = vmatpush1.msra.mxu0 %v406
    %436 = vmatprep.subr.mxu0 0.0
    %437 = vmatpush1.msra.mxu0 %v407
    %438 = vmatprep.subr.mxu0 0.0
    %439 = vmatpush1.msra.mxu0 %v408
    %440 = vmatprep.subr.mxu0 0.0
    %441 = vmatpush1.msra.mxu0 %v409
    %442 = vmatprep.subr.mxu0 0.0
    %443 = vmatpush1.msra.mxu0 %v410
    %444 = vmatprep.subr.mxu0 0.0
    %445 = vmatpush1.msra.mxu0 %v411
    %446 = vmatprep.subr.mxu0 0.0
    %447 = vmatpush1.msra.mxu0 %v412
    %448 = vmatprep.subr.mxu0 0.0
    %449 = vmatpush1.msra.mxu0 %v413
    %450 = vmatprep.subr.mxu0 0.0
    %451 = vmatpush1.msra.mxu0 %v414
    %452 = vmatprep.subr.mxu0 0.0
    %453 = vmatpush1.msra.mxu0 0.0
    %454 = vmatprep.subr.mxu0 0.0
    %455 = vmatpush1.msra.mxu0 0.0
    %456 = vmatprep.subr.mxu0 0.0
    %457 = vmatpush1.msra.mxu0 0.0
    %458 = vmatprep.subr.mxu0 0.0
    %459 = vmatpush1.msra.mxu0 0.0
    %460 = vmatprep.subr.mxu0 0.0
    %461 = vmatpush1.msra.mxu0 0.0
    %462 = vmatprep.subr.mxu0 0.0
    %463 = vmatpush1.msra.mxu0 0.0
    %464 = vmatprep.subr.mxu0 0.0
    %465 = vmatpush1.msra.mxu0 0.0
    %466 = vmatprep.subr.mxu0 0.0
    %467 = vmatpush1.msra.mxu0 0.0
    %468 = vmatprep.subr.mxu0 0.0
    %469 = vmatpush1.msra.mxu0 0.0
    %470 = vmatprep.subr.mxu0 0.0
    %471 = vmatpush1.msra.mxu0 0.0
    %472 = vmatprep.subr.mxu0 0.0
    %473 = vmatpush1.msra.mxu0 0.0
    %474 = vmatprep.subr.mxu0 0.0
    %475 = vmatpush1.msra.mxu0 0.0
    %476 = vmatprep.subr.mxu0 0.0
    %477 = vmatpush1.msra.mxu0 0.0
    %478 = vmatprep.subr.mxu0 0.0
    %479 = vmatpush1.msra.mxu0 0.0
    %480 = vmatprep.subr.mxu0 0.0
    %481 = vmatpush1.msra.mxu0 0.0
    %482 = vmatprep.subr.mxu0 0.0
    %483 = vmatpush1.msra.mxu0 0.0
    %484 = vmatprep.mubr.f32.mxu0 0.0
    %485 = vmatmul.mubr.f32.gmra.mrb[0].mxu0 %v396
    %v486 = vpop.f32.mrb[0].mxu0
    %v487 = vadd.f32 %v419, %v486
    %v488 = vpop.f32.mrb[0].mxu0
    %489 = vdwg.mxu0
    %v490 = vmax.f32 %v487, 0.0
    %v491 = vld [vmem:[#allocation11] sm:$0xff]
    %v492 = vld [vmem:[#allocation11 + $0x8] sm:$0xff]
    %v493 = vld [vmem:[#allocation11 + $0x10] sm:$0xff]
    %v494 = vld [vmem:[#allocation11 + $0x18] sm:$0xff]
    %v495 = vld [vmem:[#allocation11 + $0x20] sm:$0xff]
    %v496 = vld [vmem:[#allocation11 + $0x28] sm:$0xff]
    %v497 = vld [vmem:[#allocation11 + $0x30] sm:$0xff]
    %v498 = vld [vmem:[#allocation11 + $0x38] sm:$0xff]
    %v499 = vld [vmem:[#allocation11 + $0x40] sm:$0xff]
    %v500 = vld [vmem:[#allocation11 + $0x48] sm:$0xff]
    %v501 = vld [vmem:[#allocation11 + $0x50] sm:$0xff]
    %v502 = vld [vmem:[#allocation11 + $0x58] sm:$0xff]
    %v503 = vld [vmem:[#allocation11 + $0x60] sm:$0xff]
    %v504 = vld [vmem:[#allocation11 + $0x68] sm:$0xff]
    %v505 = vld [vmem:[#allocation11 + $0x70] sm:$0xff]
    %v506 = vld [vmem:[#allocation11 + $0x78] sm:$0xff]
    %v507 = vld [vmem:[%s7 + $0x4] sm:$0x1]
    %v508 = vlaneseq
    %v509 = vshrl.u32 %v508, 7
    %v510 = vsub.s32 0, %v509
    %v511 = vrot.slane %v507, %v510
    %512 = vmatprep.subr.mxu0 0.0
    %513 = vmatpush1.msra.mxu0 %v491
    %514 = vmatprep.subr.mxu0 0.0
    %515 = vmatpush1.msra.mxu0 %v492
    %516 = vmatprep.subr.mxu0 0.0
    %517 = vmatpush1.msra.mxu0 %v493
    %518 = vmatprep.subr.mxu0 0.0
    %519 = vmatpush1.msra.mxu0 %v494
    %520 = vmatprep.subr.mxu0 0.0
    %521 = vmatpush1.msra.mxu0 %v495
    %522 = vmatprep.subr.mxu0 0.0
    %523 = vmatpush1.msra.mxu0 %v496
    %524 = vmatprep.subr.mxu0 0.0
    %525 = vmatpush1.msra.mxu0 %v497
    %526 = vmatprep.subr.mxu0 0.0
    %527 = vmatpush1.msra.mxu0 %v498
    %528 = vmatprep.subr.mxu0 0.0
    %529 = vmatpush1.msra.mxu0 %v499
    %530 = vmatprep.subr.mxu0 0.0
    %531 = vmatpush1.msra.mxu0 %v500
    %532 = vmatprep.subr.mxu0 0.0
    %533 = vmatpush1.msra.mxu0 %v501
    %534 = vmatprep.subr.mxu0 0.0
    %535 = vmatpush1.msra.mxu0 %v502
    %536 = vmatprep.subr.mxu0 0.0
    %537 = vmatpush1.msra.mxu0 %v503
    %538 = vmatprep.subr.mxu0 0.0
    %539 = vmatpush1.msra.mxu0 %v504
    %540 = vmatprep.subr.mxu0 0.0
    %541 = vmatpush1.msra.mxu0 %v505
    %542 = vmatprep.subr.mxu0 0.0
    %543 = vmatpush1.msra.mxu0 %v506
    %544 = vmatprep.subr.mxu0 0.0
    %545 = vmatpush1.msra.mxu0 0.0
    %546 = vmatprep.subr.mxu0 0.0
    %547 = vmatpush1.msra.mxu0 0.0
    %548 = vmatprep.subr.mxu0 0.0
    %549 = vmatpush1.msra.mxu0 0.0
    %550 = vmatprep.subr.mxu0 0.0
    %551 = vmatpush1.msra.mxu0 0.0
    %552 = vmatprep.subr.mxu0 0.0
    %553 = vmatpush1.msra.mxu0 0.0
    %554 = vmatprep.subr.mxu0 0.0
    %555 = vmatpush1.msra.mxu0 0.0
    %556 = vmatprep.subr.mxu0 0.0
    %557 = vmatpush1.msra.mxu0 0.0
    %558 = vmatprep.subr.mxu0 0.0
    %559 = vmatpush1.msra.mxu0 0.0
    %560 = vmatprep.subr.mxu0 0.0
    %561 = vmatpush1.msra.mxu0 0.0
    %562 = vmatprep.subr.mxu0 0.0
    %563 = vmatpush1.msra.mxu0 0.0
    %564 = vmatprep.subr.mxu0 0.0
    %565 = vmatpush1.msra.mxu0 0.0
    %566 = vmatprep.subr.mxu0 0.0
    %567 = vmatpush1.msra.mxu0 0.0
    %568 = vmatprep.subr.mxu0 0.0
    %569 = vmatpush1.msra.mxu0 0.0
    %570 = vmatprep.subr.mxu0 0.0
    %571 = vmatpush1.msra.mxu0 0.0
    %572 = vmatprep.subr.mxu0 0.0
    %573 = vmatpush1.msra.mxu0 0.0
    %574 = vmatprep.subr.mxu0 0.0
    %575 = vmatpush1.msra.mxu0 0.0
    %576 = vmatprep.mubr.f32.mxu0 0.0
    %577 = vmatmul.mubr.f32.gmra.mrb[0].mxu0 %v490
    %v578 = vpop.f32.mrb[0].mxu0
    %v579 = vadd.f32 %v511, %v578
    %v580 = vpop.f32.mrb[0].mxu0
    %581 = vdwg.mxu0
    %v582 = vmax.f32 %v579, 0.0
    %v583 = vld [vmem:[#allocation13] sm:$0xff]
    %v584 = vld [vmem:[#allocation13 + $0x8] sm:$0xff]
    %v585 = vld [vmem:[#allocation13 + $0x10] sm:$0xff]
    %v586 = vld [vmem:[#allocation13 + $0x18] sm:$0xff]
    %v587 = vld [vmem:[#allocation13 + $0x20] sm:$0xff]
    %v588 = vld [vmem:[#allocation13 + $0x28] sm:$0xff]
    %v589 = vld [vmem:[#allocation13 + $0x30] sm:$0xff]
    %v590 = vld [vmem:[#allocation13 + $0x38] sm:$0xff]
    %v591 = vld [vmem:[#allocation13 + $0x40] sm:$0xff]
    %v592 = vld [vmem:[#allocation13 + $0x48] sm:$0xff]
    %v593 = vld [vmem:[#allocation13 + $0x50] sm:$0xff]
    %v594 = vld [vmem:[#allocation13 + $0x58] sm:$0xff]
    %v595 = vld [vmem:[#allocation13 + $0x60] sm:$0xff]
    %v596 = vld [vmem:[#allocation13 + $0x68] sm:$0xff]
    %v597 = vld [vmem:[#allocation13 + $0x70] sm:$0xff]
    %v598 = vld [vmem:[#allocation13 + $0x78] sm:$0xff]
    %v599 = vld [vmem:[%s7 + $0x5] sm:$0x1]
    %v600 = vlaneseq
    %v601 = vshrl.u32 %v600, 7
    %v602 = vsub.s32 0, %v601
    %v603 = vrot.slane %v599, %v602
    %604 = vmatprep.subr.mxu0 0.0
    %605 = vmatpush1.msra.mxu0 %v583
    %606 = vmatprep.subr.mxu0 0.0
    %607 = vmatpush1.msra.mxu0 %v584
    %608 = vmatprep.subr.mxu0 0.0
    %609 = vmatpush1.msra.mxu0 %v585
    %610 = vmatprep.subr.mxu0 0.0
    %611 = vmatpush1.msra.mxu0 %v586
    %612 = vmatprep.subr.mxu0 0.0
    %613 = vmatpush1.msra.mxu0 %v587
    %614 = vmatprep.subr.mxu0 0.0
    %615 = vmatpush1.msra.mxu0 %v588
    %616 = vmatprep.subr.mxu0 0.0
    %617 = vmatpush1.msra.mxu0 %v589
    %618 = vmatprep.subr.mxu0 0.0
    %619 = vmatpush1.msra.mxu0 %v590
    %620 = vmatprep.subr.mxu0 0.0
    %621 = vmatpush1.msra.mxu0 %v591
    %622 = vmatprep.subr.mxu0 0.0
    %623 = vmatpush1.msra.mxu0 %v592
    %624 = vmatprep.subr.mxu0 0.0
    %625 = vmatpush1.msra.mxu0 %v593
    %626 = vmatprep.subr.mxu0 0.0
    %627 = vmatpush1.msra.mxu0 %v594
    %628 = vmatprep.subr.mxu0 0.0
    %629 = vmatpush1.msra.mxu0 %v595
    %630 = vmatprep.subr.mxu0 0.0
    %631 = vmatpush1.msra.mxu0 %v596
    %632 = vmatprep.subr.mxu0 0.0
    %633 = vmatpush1.msra.mxu0 %v597
    %634 = vmatprep.subr.mxu0 0.0
    %635 = vmatpush1.msra.mxu0 %v598
    %636 = vmatprep.subr.mxu0 0.0
    %637 = vmatpush1.msra.mxu0 0.0
    %638 = vmatprep.subr.mxu0 0.0
    %639 = vmatpush1.msra.mxu0 0.0
    %640 = vmatprep.subr.mxu0 0.0
    %641 = vmatpush1.msra.mxu0 0.0
    %642 = vmatprep.subr.mxu0 0.0
    %643 = vmatpush1.msra.mxu0 0.0
    %644 = vmatprep.subr.mxu0 0.0
    %645 = vmatpush1.msra.mxu0 0.0
    %646 = vmatprep.subr.mxu0 0.0
    %647 = vmatpush1.msra.mxu0 0.0
    %648 = vmatprep.subr.mxu0 0.0
    %649 = vmatpush1.msra.mxu0 0.0
    %650 = vmatprep.subr.mxu0 0.0
    %651 = vmatpush1.msra.mxu0 0.0
    %652 = vmatprep.subr.mxu0 0.0
    %653 = vmatpush1.msra.mxu0 0.0
    %654 = vmatprep.subr.mxu0 0.0
    %655 = vmatpush1.msra.mxu0 0.0
    %656 = vmatprep.subr.mxu0 0.0
    %657 = vmatpush1.msra.mxu0 0.0
    %658 = vmatprep.subr.mxu0 0.0
    %659 = vmatpush1.msra.mxu0 0.0
    %660 = vmatprep.subr.mxu0 0.0
    %661 = vmatpush1.msra.mxu0 0.0
    %662 = vmatprep.subr.mxu0 0.0
    %663 = vmatpush1.msra.mxu0 0.0
    %664 = vmatprep.subr.mxu0 0.0
    %665 = vmatpush1.msra.mxu0 0.0
    %666 = vmatprep.subr.mxu0 0.0
    %667 = vmatpush1.msra.mxu0 0.0
    %668 = vmatprep.mubr.f32.mxu0 0.0
    %669 = vmatmul.mubr.f32.gmra.mrb[0].mxu0 %v582
    %v670 = vpop.f32.mrb[0].mxu0
    %v671 = vadd.f32 %v603, %v670
    %v672 = vpop.f32.mrb[0].mxu0
    %673 = vdwg.mxu0
    %674 = vst [vmem:[#allocation14] sm:$0xff] %v671
    // Predicated region
    $region62: #{tpu_custom_call.1} parent=1 // pred_check
      _
    $region63: #{tpu_custom_call.1} parent=1 // pred_check_branch
      %676 = sbr.rel (0) target = $region65
    $region64: #{tpu_custom_call.1} parent=1 // pred_region
      %s678 = ssub.s32 128, 128
      %679 = vsyncadd [#allocation4], %s678
      %s681 = sshll.u32 [#allocation14], 4
      %s682 = int_to_ptr.vmem [resolvable:$true] %s681
      %684 = dma.vmem_to_hbm [thread:$0]  %s682, 128, %s8, [#allocation4]
    $region65: #{tpu_custom_call.1} parent=1 // pred_fallthru
      _
    // Predicated region
    $region66: #{tpu_custom_call.1} parent=1 // pred_check
      _
    $region67: #{tpu_custom_call.1} parent=1 // pred_check_branch
      %686 = sbr.rel (0) target = $region69
    $region68: #{tpu_custom_call.1} parent=1 // pred_region
      %687 = dma.done [#allocation4], 128
    $region69: #{tpu_custom_call.1} parent=1 // pred_fallthru
      _
    %688 = vsyncpa [#allocation3], 1
    %689 = vsyncpa [#allocation6], 1
    %690 = vsyncpa [#allocation9], 1
    %691 = vsyncpa [#allocation12], 1
    %692 = vsyncpa [#allocation4], 1

// kernel: tpu_custom_call.1
$region0: #{tpu_custom_call.1}
  #allocation0 [shape = 'u32[]', space=smem, size = 0x4, offset = 0x4, fixed_abs, tag = 'smem constant byte address 0x4 - core index']
  #allocation1 [shape = 'u32[144,128]{1,0:T(1,128)}', space=vmem, size = 0x12000, scoped, tag = 'internal scratch']
  %s0 = inlined_call_operand.hbm [shape: f32[8,128], index: 0, kind: input, shape index: {}]
  %s1 = inlined_call_operand.hbm [shape: f32[128,128], index: 1, kind: input, shape index: {}]
  %s2 = inlined_call_operand.hbm [shape: f32[128,128], index: 2, kind: input, shape index: {}]
  %s3 = inlined_call_operand.hbm [shape: f32[128,128], index: 3, kind: input, shape index: {}]
  %s4 = inlined_call_operand.hbm [shape: f32[128,128], index: 4, kind: input, shape index: {}]
  %s5 = inlined_call_operand.hbm [shape: f32[128,128], index: 5, kind: input, shape index: {}]
  %s6 = inlined_call_operand.hbm [shape: f32[128,128], index: 6, kind: input, shape index: {}]
  %s7 = inlined_call_operand.vmem [shape: f32[6,128], index: 7, kind: input, shape index: {}]
  %s8 = inlined_call_operand.hbm [shape: f32[8,128], index: 8, kind: output, shape index: {}]
  %s9 = sld [smem:[#allocation0]]
  $region70: #{tpu_custom_call.1} parent=0
    _
  %s11 = ssub.s32 1, %s9
  %s12 = scalar_select 0, %s11, %s9
  $region1: #{tpu_custom_call.1} parent=0
    #allocation2 [shape = 'u8[4096]{0}', space=vmem, size = 0x1000, scoped, tag = 'input window, operand 0, single buffered']
    #allocation3 [shape = 's32[1]{0}', space=sflag, size = 0x4, scoped, tag = 'scoped memory for tpu_custom_call.1']
    #allocation4 [shape = 's32[1]{0}', space=sflag, size = 0x4, scoped, tag = 'scoped memory for tpu_custom_call.1']
    #allocation5 [shape = 'u8[65536]{0}', space=vmem, size = 0x10000, scoped, tag = 'input window, operand 1, single buffered']
    #allocation6 [shape = 's32[1]{0}', space=sflag, size = 0x4, scoped, tag = 'scoped memory for tpu_custom_call.1']
    #allocation7 [shape = 'u8[65536]{0}', space=vmem, size = 0x10000, scoped, tag = 'input window, operand 2, single buffered']
    #allocation8 [shape = 'u8[65536]{0}', space=vmem, size = 0x10000, scoped, tag = 'input window, operand 3, single buffered']
    #allocation9 [shape = 's32[1]{0}', space=sflag, size = 0x4, scoped, tag = 'scoped memory for tpu_custom_call.1']
    #allocation10 [shape = 'u8[65536]{0}', space=vmem, size = 0x10000, scoped, tag = 'input window, operand 4, single buffered']
    #allocation11 [shape = 'u8[65536]{0}', space=vmem, size = 0x10000, scoped, tag = 'input window, operand 5, single buffered']
    #allocation12 [shape = 's32[1]{0}', space=sflag, size = 0x4, scoped, tag = 'scoped memory for tpu_custom_call.1']
    #allocation13 [shape = 'u8[65536]{0}', space=vmem, size = 0x10000, scoped, tag = 'input window, operand 6, single buffered']
    #allocation14 [shape = 'u8[4096]{0}', space=vmem, size = 0x1000, scoped, tag = 'output window, operand 0, single buffered']
    %13 = vsyncpa [#allocation3], 0
    %14 = vsyncpa [#allocation6], 0
    %15 = vsyncpa [#allocation9], 0
    %16 = vsyncpa [#allocation12], 0
    %17 = vsyncpa [#allocation4], 0
    // Predicated region
    $region2: #{tpu_custom_call.1} parent=1 // pred_check
      _
    $region3: #{tpu_custom_call.1} parent=1 // pred_check_branch
      %19 = sbr.rel (0) target = $region5
    $region4: #{tpu_custom_call.1} parent=1 // pred_region
      %s21 = ssub.s32 128, 128
      %22 = vsyncadd [#allocation3], %s21
      %s24 = sshll.u32 [#allocation2], 4
      %s25 = int_to_ptr.vmem [resolvable:$true] %s24
      %27 = dma.hbm_to_vmem [thread:$0]  %s0, 128, %s25, [#allocation3]
    $region5: #{tpu_custom_call.1} parent=1 // pred_fallthru
      _
    // Predicated region
    $region6: #{tpu_custom_call.1} parent=1 // pred_check
      _
    $region7: #{tpu_custom_call.1} parent=1 // pred_check_branch
      %29 = sbr.rel (0) target = $region9
    $region8: #{tpu_custom_call.1} parent=1 // pred_region
      %s31 = ssub.s32 2048, 2048
      %32 = vsyncadd [#allocation6], %s31
      %s33 = sshll.u32 [#allocation5], 4
      %s34 = int_to_ptr.vmem [resolvable:$true] %s33
      %39 = dma.hbm_to_vmem [thread:$0]  %s1, 2048, %s34, [#allocation6], 128, 128, 8
    $region9: #{tpu_custom_call.1} parent=1 // pred_fallthru
      _
    // Predicated region
    $region10: #{tpu_custom_call.1} parent=1 // pred_check
      _
    $region11: #{tpu_custom_call.1} parent=1 // pred_check_branch
      %41 = sbr.rel (0) target = $region13
    $region12: #{tpu_custom_call.1} parent=1 // pred_region
      %s43 = ssub.s32 2048, 2048
      %44 = vsyncadd [#allocation6], %s43
      %s45 = sshll.u32 [#allocation7], 4
      %s46 = int_to_ptr.vmem [resolvable:$true] %s45
      %51 = dma.hbm_to_vmem [thread:$0]  %s2, 2048, %s46, [#allocation6], 128, 128, 8
    $region13: #{tpu_custom_call.1} parent=1 // pred_fallthru
      _
    // Predicated region
    $region14: #{tpu_custom_call.1} parent=1 // pred_check
      _
    $region15: #{tpu_custom_call.1} parent=1 // pred_check_branch
      %53 = sbr.rel (0) target = $region17
    $region16: #{tpu_custom_call.1} parent=1 // pred_region
      %s55 = ssub.s32 2048, 2048
      %56 = vsyncadd [#allocation9], %s55
      %s57 = sshll.u32 [#allocation8], 4
      %s58 = int_to_ptr.vmem [resolvable:$true] %s57
      %63 = dma.hbm_to_vmem [thread:$0]  %s3, 2048, %s58, [#allocation9], 128, 128, 8
    $region17: #{tpu_custom_call.1} parent=1 // pred_fallthru
      _
    // Predicated region
    $region18: #{tpu_custom_call.1} parent=1 // pred_check
      _
    $region19: #{tpu_custom_call.1} parent=1 // pred_check_branch
      %65 = sbr.rel (0) target = $region21
    $region20: #{tpu_custom_call.1} parent=1 // pred_region
      %s67 = ssub.s32 2048, 2048
      %68 = vsyncadd [#allocation9], %s67
      %s69 = sshll.u32 [#allocation10], 4
      %s70 = int_to_ptr.vmem [resolvable:$true] %s69
      %75 = dma.hbm_to_vmem [thread:$0]  %s4, 2048, %s70, [#allocation9], 128, 128, 8
    $region21: #{tpu_custom_call.1} parent=1 // pred_fallthru
      _
    // Predicated region
    $region22: #{tpu_custom_call.1} parent=1 // pred_check
      _
    $region23: #{tpu_custom_call.1} parent=1 // pred_check_branch
      %77 = sbr.rel (0) target = $region25
    $region24: #{tpu_custom_call.1} parent=1 // pred_region
      %s79 = ssub.s32 2048, 2048
      %80 = vsyncadd [#allocation12], %s79
      %s81 = sshll.u32 [#allocation11], 4
      %s82 = int_to_ptr.vmem [resolvable:$true] %s81
      %87 = dma.hbm_to_vmem [thread:$0]  %s5, 2048, %s82, [#allocation12], 128, 128, 8
    $region25: #{tpu_custom_call.1} parent=1 // pred_fallthru
      _
    // Predicated region
    $region26: #{tpu_custom_call.1} parent=1 // pred_check
      _
    $region27: #{tpu_custom_call.1} parent=1 // pred_check_branch
      %89 = sbr.rel (0) target = $region29
    $region28: #{tpu_custom_call.1} parent=1 // pred_region
      %s91 = ssub.s32 2048, 2048
      %92 = vsyncadd [#allocation12], %s91
      %s93 = sshll.u32 [#allocation13], 4
      %s94 = int_to_ptr.vmem [resolvable:$true] %s93
      %99 = dma.hbm_to_vmem [thread:$0]  %s6, 2048, %s94, [#allocation12], 128, 128, 8
    $region29: #{tpu_custom_call.1} parent=1 // pred_fallthru
      _
    // Predicated region
    $region30: #{tpu_custom_call.1} parent=1 // pred_check
      _
    $region31: #{tpu_custom_call.1} parent=1 // pred_check_branch
      %101 = sbr.rel (0) target = $region33
    $region32: #{tpu_custom_call.1} parent=1 // pred_region
      _
    $region33: #{tpu_custom_call.1} parent=1 // pred_fallthru
      _
    // Predicated region
    $region34: #{tpu_custom_call.1} parent=1 // pred_check
      _
    $region35: #{tpu_custom_call.1} parent=1 // pred_check_branch
      %103 = sbr.rel (0) target = $region37
    $region36: #{tpu_custom_call.1} parent=1 // pred_region
      %104 = dma.done [#allocation3], 128
    $region37: #{tpu_custom_call.1} parent=1 // pred_fallthru
      _
    // Predicated region
    $region38: #{tpu_custom_call.1} parent=1 // pred_check
      _
    $region39: #{tpu_custom_call.1} parent=1 // pred_check_branch
      %106 = sbr.rel (0) target = $region41
    $region40: #{tpu_custom_call.1} parent=1 // pred_region
      %107 = dma.done [#allocation6], 2048
    $region41: #{tpu_custom_call.1} parent=1 // pred_fallthru
      _
    // Predicated region
    $region42: #{tpu_custom_call.1} parent=1 // pred_check
      _
    $region43: #{tpu_custom_call.1} parent=1 // pred_check_branch
      %109 = sbr.rel (0) target = $region45
    $region44: #{tpu_custom_call.1} parent=1 // pred_region
      %110 = dma.done [#allocation6], 2048
    $region45: #{tpu_custom_call.1} parent=1 // pred_fallthru
      _
    // Predicated region
    $region46: #{tpu_custom_call.1} parent=1 // pred_check
      _
    $region47: #{tpu_custom_call.1} parent=1 // pred_check_branch
      %112 = sbr.rel (0) target = $region49
    $region48: #{tpu_custom_call.1} parent=1 // pred_region
      %113 = dma.done [#allocation9], 2048
    $region49: #{tpu_custom_call.1} parent=1 // pred_fallthru
      _
    // Predicated region
    $region50: #{tpu_custom_call.1} parent=1 // pred_check
      _
    $region51: #{tpu_custom_call.1} parent=1 // pred_check_branch
      %115 = sbr.rel (0) target = $region53
    $region52: #{tpu_custom_call.1} parent=1 // pred_region
      %116 = dma.done [#allocation9], 2048
    $region53: #{tpu_custom_call.1} parent=1 // pred_fallthru
      _
    // Predicated region
    $region54: #{tpu_custom_call.1} parent=1 // pred_check
      _
    $region55: #{tpu_custom_call.1} parent=1 // pred_check_branch
      %118 = sbr.rel (0) target = $region57
    $region56: #{tpu_custom_call.1} parent=1 // pred_region
      %119 = dma.done [#allocation12], 2048
    $region57: #{tpu_custom_call.1} parent=1 // pred_fallthru
      _
    // Predicated region
    $region58: #{tpu_custom_call.1} parent=1 // pred_check
      _
    $region59: #{tpu_custom_call.1} parent=1 // pred_check_branch
      %121 = sbr.rel (0) target = $region61
    $region60: #{tpu_custom_call.1} parent=1 // pred_region
      %122 = dma.done [#allocation12], 2048
    $region61: #{tpu_custom_call.1} parent=1 // pred_fallthru
      _
    %v123 = vld [vmem:[#allocation2] sm:$0xff]
    %v124 = vld [vmem:[#allocation5] sm:$0xff]
    %v125 = vld [vmem:[#allocation5 + $0x8] sm:$0xff]
    %v126 = vld [vmem:[#allocation5 + $0x10] sm:$0xff]
    %v127 = vld [vmem:[#allocation5 + $0x18] sm:$0xff]
    %v128 = vld [vmem:[#allocation5 + $0x20] sm:$0xff]
    %v129 = vld [vmem:[#allocation5 + $0x28] sm:$0xff]
    %v130 = vld [vmem:[#allocation5 + $0x30] sm:$0xff]
    %v131 = vld [vmem:[#allocation5 + $0x38] sm:$0xff]
    %v132 = vld [vmem:[#allocation5 + $0x40] sm:$0xff]
    %v133 = vld [vmem:[#allocation5 + $0x48] sm:$0xff]
    %v134 = vld [vmem:[#allocation5 + $0x50] sm:$0xff]
    %v135 = vld [vmem:[#allocation5 + $0x58] sm:$0xff]
    %v136 = vld [vmem:[#allocation5 + $0x60] sm:$0xff]
    %v137 = vld [vmem:[#allocation5 + $0x68] sm:$0xff]
    %v138 = vld [vmem:[#allocation5 + $0x70] sm:$0xff]
    %v139 = vld [vmem:[#allocation5 + $0x78] sm:$0xff]
    %v140 = vld [vmem:[%s7] sm:$0x1]
    %v141 = vlaneseq
    %v142 = vshrl.u32 %v141, 7
    %v143 = vsub.s32 0, %v142
    %v144 = vrot.slane %v140, %v143
    %145 = vmatprep.subr.mxu0 0.0
    %146 = vmatpush1.msra.mxu0 %v124
    %147 = vmatprep.subr.mxu0 0.0
    %148 = vmatpush1.msra.mxu0 %v125
    %149 = vmatprep.subr.mxu0 0.0
    %150 = vmatpush1.msra.mxu0 %v126
    %151 = vmatprep.subr.mxu0 0.0
    %152 = vmatpush1.msra.mxu0 %v127
    %153 = vmatprep.subr.mxu0 0.0
    %154 = vmatpush1.msra.mxu0 %v128
    %155 = vmatprep.subr.mxu0 0.0
    %156 = vmatpush1.msra.mxu0 %v129
    %157 = vmatprep.subr.mxu0 0.0
    %158 = vmatpush1.msra.mxu0 %v130
    %159 = vmatprep.subr.mxu0 0.0
    %160 = vmatpush1.msra.mxu0 %v131
    %161 = vmatprep.subr.mxu0 0.0
    %162 = vmatpush1.msra.mxu0 %v132
    %163 = vmatprep.subr.mxu0 0.0
    %164 = vmatpush1.msra.mxu0 %v133
    %165 = vmatprep.subr.mxu0 0.0
    %166 = vmatpush1.msra.mxu0 %v134
    %167 = vmatprep.subr.mxu0 0.0
    %168 = vmatpush1.msra.mxu0 %v135
    %169 = vmatprep.subr.mxu0 0.0
    %170 = vmatpush1.msra.mxu0 %v136
    %171 = vmatprep.subr.mxu0 0.0
    %172 = vmatpush1.msra.mxu0 %v137
    %173 = vmatprep.subr.mxu0 0.0
    %174 = vmatpush1.msra.mxu0 %v138
    %175 = vmatprep.subr.mxu0 0.0
    %176 = vmatpush1.msra.mxu0 %v139
    %177 = vmatprep.subr.mxu0 0.0
    %178 = vmatpush1.msra.mxu0 0.0
    %179 = vmatprep.subr.mxu0 0.0
    %180 = vmatpush1.msra.mxu0 0.0
    %181 = vmatprep.subr.mxu0 0.0
    %182 = vmatpush1.msra.mxu0 0.0
    %183 = vmatprep.subr.mxu0 0.0
    %184 = vmatpush1.msra.mxu0 0.0
    %185 = vmatprep.subr.mxu0 0.0
    %186 = vmatpush1.msra.mxu0 0.0
    %187 = vmatprep.subr.mxu0 0.0
    %188 = vmatpush1.msra.mxu0 0.0
    %189 = vmatprep.subr.mxu0 0.0
    %190 = vmatpush1.msra.mxu0 0.0
    %191 = vmatprep.subr.mxu0 0.0
    %192 = vmatpush1.msra.mxu0 0.0
    %193 = vmatprep.subr.mxu0 0.0
    %194 = vmatpush1.msra.mxu0 0.0
    %195 = vmatprep.subr.mxu0 0.0
    %196 = vmatpush1.msra.mxu0 0.0
    %197 = vmatprep.subr.mxu0 0.0
    %198 = vmatpush1.msra.mxu0 0.0
    %199 = vmatprep.subr.mxu0 0.0
    %200 = vmatpush1.msra.mxu0 0.0
    %201 = vmatprep.subr.mxu0 0.0
    %202 = vmatpush1.msra.mxu0 0.0
    %203 = vmatprep.subr.mxu0 0.0
    %204 = vmatpush1.msra.mxu0 0.0
    %205 = vmatprep.subr.mxu0 0.0
    %206 = vmatpush1.msra.mxu0 0.0
    %207 = vmatprep.subr.mxu0 0.0
    %208 = vmatpush1.msra.mxu0 0.0
    %209 = vmatprep.mubr.f32.mxu0 0.0
    %210 = vmatmul.mubr.f32.gmra.mrb[0].mxu0 %v123
    %v211 = vpop.f32.mrb[0].mxu0
    %v212 = vadd.f32 %v144, %v211
    %v213 = vpop.f32.mrb[0].mxu0
    %214 = vdwg.mxu0
    %v215 = vmax.f32 %v212, 0.0
    %v216 = vld [vmem:[#allocation7] sm:$0xff]
    %v217 = vld [vmem:[#allocation7 + $0x8] sm:$0xff]
    %v218 = vld [vmem:[#allocation7 + $0x10] sm:$0xff]
    %v219 = vld [vmem:[#allocation7 + $0x18] sm:$0xff]
    %v220 = vld [vmem:[#allocation7 + $0x20] sm:$0xff]
    %v221 = vld [vmem:[#allocation7 + $0x28] sm:$0xff]
    %v222 = vld [vmem:[#allocation7 + $0x30] sm:$0xff]
    %v223 = vld [vmem:[#allocation7 + $0x38] sm:$0xff]
    %v224 = vld [vmem:[#allocation7 + $0x40] sm:$0xff]
    %v225 = vld [vmem:[#allocation7 + $0x48] sm:$0xff]
    %v226 = vld [vmem:[#allocation7 + $0x50] sm:$0xff]
    %v227 = vld [vmem:[#allocation7 + $0x58] sm:$0xff]
    %v228 = vld [vmem:[#allocation7 + $0x60] sm:$0xff]
    %v229 = vld [vmem:[#allocation7 + $0x68] sm:$0xff]
    %v230 = vld [vmem:[#allocation7 + $0x70] sm:$0xff]
    %v231 = vld [vmem:[#allocation7 + $0x78] sm:$0xff]
    %v232 = vld [vmem:[%s7 + $0x1] sm:$0x1]
    %v233 = vlaneseq
    %v234 = vshrl.u32 %v233, 7
    %v235 = vsub.s32 0, %v234
    %v236 = vrot.slane %v232, %v235
    %237 = vmatprep.subr.mxu0 0.0
    %238 = vmatpush1.msra.mxu0 %v216
    %239 = vmatprep.subr.mxu0 0.0
    %240 = vmatpush1.msra.mxu0 %v217
    %241 = vmatprep.subr.mxu0 0.0
    %242 = vmatpush1.msra.mxu0 %v218
    %243 = vmatprep.subr.mxu0 0.0
    %244 = vmatpush1.msra.mxu0 %v219
    %245 = vmatprep.subr.mxu0 0.0
    %246 = vmatpush1.msra.mxu0 %v220
    %247 = vmatprep.subr.mxu0 0.0
    %248 = vmatpush1.msra.mxu0 %v221
    %249 = vmatprep.subr.mxu0 0.0
    %250 = vmatpush1.msra.mxu0 %v222
    %251 = vmatprep.subr.mxu0 0.0
    %252 = vmatpush1.msra.mxu0 %v223
    %253 = vmatprep.subr.mxu0 0.0
    %254 = vmatpush1.msra.mxu0 %v224
    %255 = vmatprep.subr.mxu0 0.0
    %256 = vmatpush1.msra.mxu0 %v225
    %257 = vmatprep.subr.mxu0 0.0
    %258 = vmatpush1.msra.mxu0 %v226
    %259 = vmatprep.subr.mxu0 0.0
    %260 = vmatpush1.msra.mxu0 %v227
    %261 = vmatprep.subr.mxu0 0.0
    %262 = vmatpush1.msra.mxu0 %v228
    %263 = vmatprep.subr.mxu0 0.0
    %264 = vmatpush1.msra.mxu0 %v229
    %265 = vmatprep.subr.mxu0 0.0
    %266 = vmatpush1.msra.mxu0 %v230
    %267 = vmatprep.subr.mxu0 0.0
    %268 = vmatpush1.msra.mxu0 %v231
    %269 = vmatprep.subr.mxu0 0.0
    %270 = vmatpush1.msra.mxu0 0.0
    %271 = vmatprep.subr.mxu0 0.0
    %272 = vmatpush1.msra.mxu0 0.0
    %273 = vmatprep.subr.mxu0 0.0
    %274 = vmatpush1.msra.mxu0 0.0
    %275 = vmatprep.subr.mxu0 0.0
    %276 = vmatpush1.msra.mxu0 0.0
    %277 = vmatprep.subr.mxu0 0.0
    %278 = vmatpush1.msra.mxu0 0.0
    %279 = vmatprep.subr.mxu0 0.0
    %280 = vmatpush1.msra.mxu0 0.0
    %281 = vmatprep.subr.mxu0 0.0
    %282 = vmatpush1.msra.mxu0 0.0
    %283 = vmatprep.subr.mxu0 0.0
    %284 = vmatpush1.msra.mxu0 0.0
    %285 = vmatprep.subr.mxu0 0.0
    %286 = vmatpush1.msra.mxu0 0.0
    %287 = vmatprep.subr.mxu0 0.0
    %288 = vmatpush1.msra.mxu0 0.0
    %289 = vmatprep.subr.mxu0 0.0
    %290 = vmatpush1.msra.mxu0 0.0
    %291 = vmatprep.subr.mxu0 0.0
    %292 = vmatpush1.msra.mxu0 0.0
    %293 = vmatprep.subr.mxu0 0.0
    %294 = vmatpush1.msra.mxu0 0.0
    %295 = vmatprep.subr.mxu0 0.0
    %296 = vmatpush1.msra.mxu0 0.0
    %297 = vmatprep.subr.mxu0 0.0
    %298 = vmatpush1.msra.mxu0 0.0
    %299 = vmatprep.subr.mxu0 0.0
    %300 = vmatpush1.msra.mxu0 0.0
    %301 = vmatprep.mubr.f32.mxu0 0.0
    %302 = vmatmul.mubr.f32.gmra.mrb[0].mxu0 %v215
    %v303 = vpop.f32.mrb[0].mxu0
    %v304 = vadd.f32 %v236, %v303
    %v305 = vpop.f32.mrb[0].mxu0
    %306 = vdwg.mxu0
    %v307 = vmax.f32 %v304, 0.0
    %v308 = vld [vmem:[#allocation8] sm:$0xff]
    %v309 = vld [vmem:[#allocation8 + $0x8] sm:$0xff]
    %v310 = vld [vmem:[#allocation8 + $0x10] sm:$0xff]
    %v311 = vld [vmem:[#allocation8 + $0x18] sm:$0xff]
    %v312 = vld [vmem:[#allocation8 + $0x20] sm:$0xff]
    %v313 = vld [vmem:[#allocation8 + $0x28] sm:$0xff]
    %v314 = vld [vmem:[#allocation8 + $0x30] sm:$0xff]
    %v315 = vld [vmem:[#allocation8 + $0x38] sm:$0xff]
    %v316 = vld [vmem:[#allocation8 + $0x40] sm:$0xff]
    %v317 = vld [vmem:[#allocation8 + $0x48] sm:$0xff]
    %v318 = vld [vmem:[#allocation8 + $0x50] sm:$0xff]
    %v319 = vld [vmem:[#allocation8 + $0x58] sm:$0xff]
    %v320 = vld [vmem:[#allocation8 + $0x60] sm:$0xff]
    %v321 = vld [vmem:[#allocation8 + $0x68] sm:$0xff]
    %v322 = vld [vmem:[#allocation8 + $0x70] sm:$0xff]
    %v323 = vld [vmem:[#allocation8 + $0x78] sm:$0xff]
    %v324 = vld [vmem:[%s7 + $0x2] sm:$0x1]
    %v325 = vlaneseq
    %v326 = vshrl.u32 %v325, 7
    %v327 = vsub.s32 0, %v326
    %v328 = vrot.slane %v324, %v327
    %329 = vmatprep.subr.mxu0 0.0
    %330 = vmatpush1.msra.mxu0 %v308
    %331 = vmatprep.subr.mxu0 0.0
    %332 = vmatpush1.msra.mxu0 %v309
    %333 = vmatprep.subr.mxu0 0.0
    %334 = vmatpush1.msra.mxu0 %v310
    %335 = vmatprep.subr.mxu0 0.0
    %336 = vmatpush1.msra.mxu0 %v311
    %337 = vmatprep.subr.mxu0 0.0
    %338 = vmatpush1.msra.mxu0 %v312
    %339 = vmatprep.subr.mxu0 0.0
    %340 = vmatpush1.msra.mxu0 %v313
    %341 = vmatprep.subr.mxu0 0.0
    %342 = vmatpush1.msra.mxu0 %v314
    %343 = vmatprep.subr.mxu0 0.0
    %344 = vmatpush1.msra.mxu0 %v315
    %345 = vmatprep.subr.mxu0 0.0
    %346 = vmatpush1.msra.mxu0 %v316
    %347 = vmatprep.subr.mxu0 0.0
    %348 = vmatpush1.msra.mxu0 %v317
    %349 = vmatprep.subr.mxu0 0.0
    %350 = vmatpush1.msra.mxu0 %v318
    %351 = vmatprep.subr.mxu0 0.0
    %352 = vmatpush1.msra.mxu0 %v319
    %353 = vmatprep.subr.mxu0 0.0
    %354 = vmatpush1.msra.mxu0 %v320
    %355 = vmatprep.subr.mxu0 0.0
    %356 = vmatpush1.msra.mxu0 %v321
    %357 = vmatprep.subr.mxu0 0.0
    %358 = vmatpush1.msra.mxu0 %v322
    %359 = vmatprep.subr.mxu0 0.0
    %360 = vmatpush1.msra.mxu0 %v323
    %361 = vmatprep.subr.mxu0 0.0
    %362 = vmatpush1.msra.mxu0 0.0
    %363 = vmatprep.subr.mxu0 0.0
    %364 = vmatpush1.msra.mxu0 0.0
    %365 = vmatprep.subr.mxu0 0.0
    %366 = vmatpush1.msra.mxu0 0.0
    %367 = vmatprep.subr.mxu0 0.0
    %368 = vmatpush1.msra.mxu0 0.0
    %369 = vmatprep.subr.mxu0 0.0
    %370 = vmatpush1.msra.mxu0 0.0
    %371 = vmatprep.subr.mxu0 0.0
    %372 = vmatpush1.msra.mxu0 0.0
    %373 = vmatprep.subr.mxu0 0.0
    %374 = vmatpush1.msra.mxu0 0.0
    %375 = vmatprep.subr.mxu0 0.0
    %376 = vmatpush1.msra.mxu0 0.0
    %377 = vmatprep.subr.mxu0 0.0
    %378 = vmatpush1.msra.mxu0 0.0
    %379 = vmatprep.subr.mxu0 0.0
    %380 = vmatpush1.msra.mxu0 0.0
    %381 = vmatprep.subr.mxu0 0.0
    %382 = vmatpush1.msra.mxu0 0.0
    %383 = vmatprep.subr.mxu0 0.0
    %384 = vmatpush1.msra.mxu0 0.0
    %385 = vmatprep.subr.mxu0 0.0
    %386 = vmatpush1.msra.mxu0 0.0
    %387 = vmatprep.subr.mxu0 0.0
    %388 = vmatpush1.msra.mxu0 0.0
    %389 = vmatprep.subr.mxu0 0.0
    %390 = vmatpush1.msra.mxu0 0.0
    %391 = vmatprep.subr.mxu0 0.0
    %392 = vmatpush1.msra.mxu0 0.0
    %393 = vmatprep.mubr.f32.mxu0 0.0
    %394 = vmatmul.mubr.f32.gmra.mrb[0].mxu0 %v307
    %v395 = vpop.f32.mrb[0].mxu0
    %v396 = vadd.f32 %v328, %v395
    %v397 = vpop.f32.mrb[0].mxu0
    %398 = vdwg.mxu0
    %v399 = vld [vmem:[#allocation10] sm:$0xff]
    %v400 = vld [vmem:[#allocation10 + $0x8] sm:$0xff]
    %v401 = vld [vmem:[#allocation10 + $0x10] sm:$0xff]
    %v402 = vld [vmem:[#allocation10 + $0x18] sm:$0xff]
    %v403 = vld [vmem:[#allocation10 + $0x20] sm:$0xff]
    %v404 = vld [vmem:[#allocation10 + $0x28] sm:$0xff]
    %v405 = vld [vmem:[#allocation10 + $0x30] sm:$0xff]
    %v406 = vld [vmem:[#allocation10 + $0x38] sm:$0xff]
    %v407 = vld [vmem:[#allocation10 + $0x40] sm:$0xff]
    %v408 = vld [vmem:[#allocation10 + $0x48] sm:$0xff]
    %v409 = vld [vmem:[#allocation10 + $0x50] sm:$0xff]
    %v410 = vld [vmem:[#allocation10 + $0x58] sm:$0xff]
    %v411 = vld [vmem:[#allocation10 + $0x60] sm:$0xff]
    %v412 = vld [vmem:[#allocation10 + $0x68] sm:$0xff]
    %v413 = vld [vmem:[#allocation10 + $0x70] sm:$0xff]
    %v414 = vld [vmem:[#allocation10 + $0x78] sm:$0xff]
    %v415 = vld [vmem:[%s7 + $0x3] sm:$0x1]
    %v416 = vlaneseq
    %v417 = vshrl.u32 %v416, 7
    %v418 = vsub.s32 0, %v417
    %v419 = vrot.slane %v415, %v418
    %420 = vmatprep.subr.mxu0 0.0
    %421 = vmatpush1.msra.mxu0 %v399
    %422 = vmatprep.subr.mxu0 0.0
    %423 = vmatpush1.msra.mxu0 %v400
    %424 = vmatprep.subr.mxu0 0.0
    %425 = vmatpush1.msra.mxu0 %v401
    %426 = vmatprep.subr.mxu0 0.0
    %427 = vmatpush1.msra.mxu0 %v402
    %428 = vmatprep.subr.mxu0 0.0
    %429 = vmatpush1.msra.mxu0 %v403
    %430 = vmatprep.subr.mxu0 0.0
    %431 = vmatpush1.msra.mxu0 %v404
    %432 = vmatprep.subr.mxu0 0.0
    %433 = vmatpush1.msra.mxu0 %v405
    %434 = vmatprep.subr.mxu0 0.0
    %435 = vmatpush1.msra.mxu0 %v406
    %436 = vmatprep.subr.mxu0 0.0
    %437 = vmatpush1.msra.mxu0 %v407
    %438 = vmatprep.subr.mxu0 0.0
    %439 = vmatpush1.msra.mxu0 %v408
    %440 = vmatprep.subr.mxu0 0.0
    %441 = vmatpush1.msra.mxu0 %v409
    %442 = vmatprep.subr.mxu0 0.0
    %443 = vmatpush1.msra.mxu0 %v410
    %444 = vmatprep.subr.mxu0 0.0
    %445 = vmatpush1.msra.mxu0 %v411
    %446 = vmatprep.subr.mxu0 0.0
    %447 = vmatpush1.msra.mxu0 %v412
    %448 = vmatprep.subr.mxu0 0.0
    %449 = vmatpush1.msra.mxu0 %v413
    %450 = vmatprep.subr.mxu0 0.0
    %451 = vmatpush1.msra.mxu0 %v414
    %452 = vmatprep.subr.mxu0 0.0
    %453 = vmatpush1.msra.mxu0 0.0
    %454 = vmatprep.subr.mxu0 0.0
    %455 = vmatpush1.msra.mxu0 0.0
    %456 = vmatprep.subr.mxu0 0.0
    %457 = vmatpush1.msra.mxu0 0.0
    %458 = vmatprep.subr.mxu0 0.0
    %459 = vmatpush1.msra.mxu0 0.0
    %460 = vmatprep.subr.mxu0 0.0
    %461 = vmatpush1.msra.mxu0 0.0
    %462 = vmatprep.subr.mxu0 0.0
    %463 = vmatpush1.msra.mxu0 0.0
    %464 = vmatprep.subr.mxu0 0.0
    %465 = vmatpush1.msra.mxu0 0.0
    %466 = vmatprep.subr.mxu0 0.0
    %467 = vmatpush1.msra.mxu0 0.0
    %468 = vmatprep.subr.mxu0 0.0
    %469 = vmatpush1.msra.mxu0 0.0
    %470 = vmatprep.subr.mxu0 0.0
    %471 = vmatpush1.msra.mxu0 0.0
    %472 = vmatprep.subr.mxu0 0.0
    %473 = vmatpush1.msra.mxu0 0.0
    %474 = vmatprep.subr.mxu0 0.0
    %475 = vmatpush1.msra.mxu0 0.0
    %476 = vmatprep.subr.mxu0 0.0
    %477 = vmatpush1.msra.mxu0 0.0
    %478 = vmatprep.subr.mxu0 0.0
    %479 = vmatpush1.msra.mxu0 0.0
    %480 = vmatprep.subr.mxu0 0.0
    %481 = vmatpush1.msra.mxu0 0.0
    %482 = vmatprep.subr.mxu0 0.0
    %483 = vmatpush1.msra.mxu0 0.0
    %484 = vmatprep.mubr.f32.mxu0 0.0
    %485 = vmatmul.mubr.f32.gmra.mrb[0].mxu0 %v396
    %v486 = vpop.f32.mrb[0].mxu0
    %v487 = vadd.f32 %v419, %v486
    %v488 = vpop.f32.mrb[0].mxu0
    %489 = vdwg.mxu0
    %v490 = vmax.f32 %v487, 0.0
    %v491 = vld [vmem:[#allocation11] sm:$0xff]
    %v492 = vld [vmem:[#allocation11 + $0x8] sm:$0xff]
    %v493 = vld [vmem:[#allocation11 + $0x10] sm:$0xff]
    %v494 = vld [vmem:[#allocation11 + $0x18] sm:$0xff]
    %v495 = vld [vmem:[#allocation11 + $0x20] sm:$0xff]
    %v496 = vld [vmem:[#allocation11 + $0x28] sm:$0xff]
    %v497 = vld [vmem:[#allocation11 + $0x30] sm:$0xff]
    %v498 = vld [vmem:[#allocation11 + $0x38] sm:$0xff]
    %v499 = vld [vmem:[#allocation11 + $0x40] sm:$0xff]
    %v500 = vld [vmem:[#allocation11 + $0x48] sm:$0xff]
    %v501 = vld [vmem:[#allocation11 + $0x50] sm:$0xff]
    %v502 = vld [vmem:[#allocation11 + $0x58] sm:$0xff]
    %v503 = vld [vmem:[#allocation11 + $0x60] sm:$0xff]
    %v504 = vld [vmem:[#allocation11 + $0x68] sm:$0xff]
    %v505 = vld [vmem:[#allocation11 + $0x70] sm:$0xff]
    %v506 = vld [vmem:[#allocation11 + $0x78] sm:$0xff]
    %v507 = vld [vmem:[%s7 + $0x4] sm:$0x1]
    %v508 = vlaneseq
    %v509 = vshrl.u32 %v508, 7
    %v510 = vsub.s32 0, %v509
    %v511 = vrot.slane %v507, %v510
    %512 = vmatprep.subr.mxu0 0.0
    %513 = vmatpush1.msra.mxu0 %v491
    %514 = vmatprep.subr.mxu0 0.0
    %515 = vmatpush1.msra.mxu0 %v492
    %516 = vmatprep.subr.mxu0 0.0
    %517 = vmatpush1.msra.mxu0 %v493
    %518 = vmatprep.subr.mxu0 0.0
    %519 = vmatpush1.msra.mxu0 %v494
    %520 = vmatprep.subr.mxu0 0.0
    %521 = vmatpush1.msra.mxu0 %v495
    %522 = vmatprep.subr.mxu0 0.0
    %523 = vmatpush1.msra.mxu0 %v496
    %524 = vmatprep.subr.mxu0 0.0
    %525 = vmatpush1.msra.mxu0 %v497
    %526 = vmatprep.subr.mxu0 0.0
    %527 = vmatpush1.msra.mxu0 %v498
    %528 = vmatprep.subr.mxu0 0.0
    %529 = vmatpush1.msra.mxu0 %v499
    %530 = vmatprep.subr.mxu0 0.0
    %531 = vmatpush1.msra.mxu0 %v500
    %532 = vmatprep.subr.mxu0 0.0
    %533 = vmatpush1.msra.mxu0 %v501
    %534 = vmatprep.subr.mxu0 0.0
    %535 = vmatpush1.msra.mxu0 %v502
    %536 = vmatprep.subr.mxu0 0.0
    %537 = vmatpush1.msra.mxu0 %v503
    %538 = vmatprep.subr.mxu0 0.0
    %539 = vmatpush1.msra.mxu0 %v504
    %540 = vmatprep.subr.mxu0 0.0
    %541 = vmatpush1.msra.mxu0 %v505
    %542 = vmatprep.subr.mxu0 0.0
    %543 = vmatpush1.msra.mxu0 %v506
    %544 = vmatprep.subr.mxu0 0.0
    %545 = vmatpush1.msra.mxu0 0.0
    %546 = vmatprep.subr.mxu0 0.0
    %547 = vmatpush1.msra.mxu0 0.0
    %548 = vmatprep.subr.mxu0 0.0
    %549 = vmatpush1.msra.mxu0 0.0
    %550 = vmatprep.subr.mxu0 0.0
    %551 = vmatpush1.msra.mxu0 0.0
    %552 = vmatprep.subr.mxu0 0.0
    %553 = vmatpush1.msra.mxu0 0.0
    %554 = vmatprep.subr.mxu0 0.0
    %555 = vmatpush1.msra.mxu0 0.0
    %556 = vmatprep.subr.mxu0 0.0
    %557 = vmatpush1.msra.mxu0 0.0
    %558 = vmatprep.subr.mxu0 0.0
    %559 = vmatpush1.msra.mxu0 0.0
    %560 = vmatprep.subr.mxu0 0.0
    %561 = vmatpush1.msra.mxu0 0.0
    %562 = vmatprep.subr.mxu0 0.0
    %563 = vmatpush1.msra.mxu0 0.0
    %564 = vmatprep.subr.mxu0 0.0
    %565 = vmatpush1.msra.mxu0 0.0
    %566 = vmatprep.subr.mxu0 0.0
    %567 = vmatpush1.msra.mxu0 0.0
    %568 = vmatprep.subr.mxu0 0.0
    %569 = vmatpush1.msra.mxu0 0.0
    %570 = vmatprep.subr.mxu0 0.0
    %571 = vmatpush1.msra.mxu0 0.0
    %572 = vmatprep.subr.mxu0 0.0
    %573 = vmatpush1.msra.mxu0 0.0
    %574 = vmatprep.subr.mxu0 0.0
    %575 = vmatpush1.msra.mxu0 0.0
    %576 = vmatprep.mubr.f32.mxu0 0.0
    %577 = vmatmul.mubr.f32.gmra.mrb[0].mxu0 %v490
    %v578 = vpop.f32.mrb[0].mxu0
    %v579 = vadd.f32 %v511, %v578
    %v580 = vpop.f32.mrb[0].mxu0
    %581 = vdwg.mxu0
    %v582 = vmax.f32 %v579, 0.0
    %v583 = vld [vmem:[#allocation13] sm:$0xff]
    %v584 = vld [vmem:[#allocation13 + $0x8] sm:$0xff]
    %v585 = vld [vmem:[#allocation13 + $0x10] sm:$0xff]
    %v586 = vld [vmem:[#allocation13 + $0x18] sm:$0xff]
    %v587 = vld [vmem:[#allocation13 + $0x20] sm:$0xff]
    %v588 = vld [vmem:[#allocation13 + $0x28] sm:$0xff]
    %v589 = vld [vmem:[#allocation13 + $0x30] sm:$0xff]
    %v590 = vld [vmem:[#allocation13 + $0x38] sm:$0xff]
    %v591 = vld [vmem:[#allocation13 + $0x40] sm:$0xff]
    %v592 = vld [vmem:[#allocation13 + $0x48] sm:$0xff]
    %v593 = vld [vmem:[#allocation13 + $0x50] sm:$0xff]
    %v594 = vld [vmem:[#allocation13 + $0x58] sm:$0xff]
    %v595 = vld [vmem:[#allocation13 + $0x60] sm:$0xff]
    %v596 = vld [vmem:[#allocation13 + $0x68] sm:$0xff]
    %v597 = vld [vmem:[#allocation13 + $0x70] sm:$0xff]
    %v598 = vld [vmem:[#allocation13 + $0x78] sm:$0xff]
    %v599 = vld [vmem:[%s7 + $0x5] sm:$0x1]
    %v600 = vlaneseq
    %v601 = vshrl.u32 %v600, 7
    %v602 = vsub.s32 0, %v601
    %v603 = vrot.slane %v599, %v602
    %604 = vmatprep.subr.mxu0 0.0
    %605 = vmatpush1.msra.mxu0 %v583
    %606 = vmatprep.subr.mxu0 0.0
    %607 = vmatpush1.msra.mxu0 %v584
    %608 = vmatprep.subr.mxu0 0.0
    %609 = vmatpush1.msra.mxu0 %v585
    %610 = vmatprep.subr.mxu0 0.0
    %611 = vmatpush1.msra.mxu0 %v586
    %612 = vmatprep.subr.mxu0 0.0
    %613 = vmatpush1.msra.mxu0 %v587
    %614 = vmatprep.subr.mxu0 0.0
    %615 = vmatpush1.msra.mxu0 %v588
    %616 = vmatprep.subr.mxu0 0.0
    %617 = vmatpush1.msra.mxu0 %v589
    %618 = vmatprep.subr.mxu0 0.0
    %619 = vmatpush1.msra.mxu0 %v590
    %620 = vmatprep.subr.mxu0 0.0
    %621 = vmatpush1.msra.mxu0 %v591
    %622 = vmatprep.subr.mxu0 0.0
    %623 = vmatpush1.msra.mxu0 %v592
    %624 = vmatprep.subr.mxu0 0.0
    %625 = vmatpush1.msra.mxu0 %v593
    %626 = vmatprep.subr.mxu0 0.0
    %627 = vmatpush1.msra.mxu0 %v594
    %628 = vmatprep.subr.mxu0 0.0
    %629 = vmatpush1.msra.mxu0 %v595
    %630 = vmatprep.subr.mxu0 0.0
    %631 = vmatpush1.msra.mxu0 %v596
    %632 = vmatprep.subr.mxu0 0.0
    %633 = vmatpush1.msra.mxu0 %v597
    %634 = vmatprep.subr.mxu0 0.0
    %635 = vmatpush1.msra.mxu0 %v598
    %636 = vmatprep.subr.mxu0 0.0
    %637 = vmatpush1.msra.mxu0 0.0
    %638 = vmatprep.subr.mxu0 0.0
    %639 = vmatpush1.msra.mxu0 0.0
    %640 = vmatprep.subr.mxu0 0.0
    %641 = vmatpush1.msra.mxu0 0.0
    %642 = vmatprep.subr.mxu0 0.0
    %643 = vmatpush1.msra.mxu0 0.0
    %644 = vmatprep.subr.mxu0 0.0
    %645 = vmatpush1.msra.mxu0 0.0
    %646 = vmatprep.subr.mxu0 0.0
    %647 = vmatpush1.msra.mxu0 0.0
    %648 = vmatprep.subr.mxu0 0.0
    %649 = vmatpush1.msra.mxu0 0.0
    %650 = vmatprep.subr.mxu0 0.0
    %651 = vmatpush1.msra.mxu0 0.0
    %652 = vmatprep.subr.mxu0 0.0
    %653 = vmatpush1.msra.mxu0 0.0
    %654 = vmatprep.subr.mxu0 0.0
    %655 = vmatpush1.msra.mxu0 0.0
    %656 = vmatprep.subr.mxu0 0.0
    %657 = vmatpush1.msra.mxu0 0.0
    %658 = vmatprep.subr.mxu0 0.0
    %659 = vmatpush1.msra.mxu0 0.0
    %660 = vmatprep.subr.mxu0 0.0
    %661 = vmatpush1.msra.mxu0 0.0
    %662 = vmatprep.subr.mxu0 0.0
    %663 = vmatpush1.msra.mxu0 0.0
    %664 = vmatprep.subr.mxu0 0.0
    %665 = vmatpush1.msra.mxu0 0.0
    %666 = vmatprep.subr.mxu0 0.0
    %667 = vmatpush1.msra.mxu0 0.0
    %668 = vmatprep.mubr.f32.mxu0 0.0
    %669 = vmatmul.mubr.f32.gmra.mrb[0].mxu0 %v582
    %v670 = vpop.f32.mrb[0].mxu0
    %v671 = vadd.f32 %v603, %v670
    %v672 = vpop.f32.mrb[0].mxu0
    %673 = vdwg.mxu0
    %674 = vst [vmem:[#allocation14] sm:$0xff] %v671
    // Predicated region
    $region62: #{tpu_custom_call.1} parent=1 // pred_check
      _
    $region63: #{tpu_custom_call.1} parent=1 // pred_check_branch
      %676 = sbr.rel (0) target = $region65
    $region64: #{tpu_custom_call.1} parent=1 // pred_region
      %s678 = ssub.s32 128, 128
      %679 = vsyncadd [#allocation4], %s678
      %s681 = sshll.u32 [#allocation14], 4
      %s682 = int_to_ptr.vmem [resolvable:$true] %s681
      %684 = dma.vmem_to_hbm [thread:$0]  %s682, 128, %s8, [#allocation4]
    $region65: #{tpu_custom_call.1} parent=1 // pred_fallthru
      _
    // Predicated region
    $region66: #{tpu_custom_call.1} parent=1 // pred_check
      _
    $region67: #{tpu_custom_call.1} parent=1 // pred_check_branch
      %686 = sbr.rel (0) target = $region69
    $region68: #{tpu_custom_call.1} parent=1 // pred_region
      %687 = dma.done [#allocation4], 128
    $region69: #{tpu_custom_call.1} parent=1 // pred_fallthru
      _
    %688 = vsyncpa [#allocation3], 1
    %689 = vsyncpa [#allocation6], 1
    %690 = vsyncpa [#allocation9], 1
    %691 = vsyncpa [#allocation12], 1
    %692 = vsyncpa [#allocation4], 1

</llo_original>
